<compile_context>
chip_gen: v6e
topology: v6e:2x2x1
jax: 0.10.0
libtpu: 0.0.40
codegen_flags: <defaults>
</compile_context>

<pallas_src>
import math

import jax
import jax.numpy as jnp
from jax.experimental import pallas as pl
from jax.experimental.pallas import tpu as pltpu

# ---- ensemble hyper-parameters (small, deterministic) ----
NB = 3              # number of base models
NE = 2              # number of error models
NM = NB + NE        # models stacked for the confidence interval
B = 128             # batch rows fed to the ensemble
F = 32              # input feature dim of x
NH = 4              # heads: ('pd', 'nd', 'mod', 'dlt')
DH = 32             # per-head output dim
D = NH * DH         # 128 -> lane-dense packed head outputs per model
CI = 0.1            # registered buffer `ci`
ROW_TILES = 1       # 1 tile on single-TC v5e/v6e; set 2 on v7x (one tile per TensorCore)
EPI_CHUNK = 32      # epilogue row sub-tile (keeps the sort under the 64-vreg file)


def _quantile_coeffs(q, n):
    """torch.quantile default 'linear' interpolation indices/fraction (trace-time)."""
    pos = q * (n - 1)
    i0 = int(math.floor(pos))
    i1 = min(i0 + 1, n - 1)
    return i0, i1, pos - i0


def _make_kernel(tr, chunk):
    i0, i1, f_lo = _quantile_coeffs(CI, NM)
    j0, j1, f_hi = _quantile_coeffs(1.0 - CI, NM)

    def kernel(x_ref, w_ref, b_ref, out_ref):
        # --- single fused matmul: all NM models x all 4 heads in one (F, NM*D) RHS ---
        y = jnp.dot(x_ref[...], w_ref[...],
                    preferred_element_type=jnp.float32) + b_ref[...]   # (tr, NM*D)
        # sigmoid as one EUP transcendental (exact identity, no f32 divide)
        y = 0.5 * jnp.tanh(0.5 * y) + 0.5

        # --- chunked epilogue: mean / sort / quantile on (chunk, 128) slices ---
        for c in range(tr // chunk):                     # small static trip count
            r0 = c * chunk
            yc = y[r0:r0 + chunk, :]                     # sublane-aligned row slice
            models = [yc[:, m * D:(m + 1) * D] for m in range(NM)]  # 128-lane aligned

            # predictions: mean over the NB base models only (error models excluded)
            acc = models[0]
            for m in range(1, NB):
                acc = acc + models[m]
            out_ref[r0:r0 + chunk, 0:D] = acc * (1.0 / NB)

            # elementwise odd-even transposition sort across the model axis (pure VPU)
            s = list(models)
            for rnd in range(NM):
                for i in range(rnd % 2, NM - 1, 2):
                    a, bb = s[i], s[i + 1]
                    s[i] = jnp.minimum(a, bb)
                    s[i + 1] = jnp.maximum(a, bb)

            # quantiles at ci and 1-ci, torch.quantile 'linear' interpolation
            out_ref[r0:r0 + chunk, D:2 * D] = s[i0] + f_lo * (s[i1] - s[i0])
            out_ref[r0:r0 + chunk, 2 * D:3 * D] = s[j0] + f_hi * (s[j1] - s[j0])

    return kernel


def transition_ensemble_forward(x, w, b, row_tiles=ROW_TILES):
    """x: (B, F); w: (NM, F, D); b: (NM, 1, D). First NB models along axis 0 are the
    base models, the remaining NE are error models. Returns the module's entry dict."""
    bx, fx = x.shape
    assert w.shape == (NM, fx, D) and b.shape == (NM, 1, D)
    assert bx % row_tiles == 0
    tr = bx // row_tiles
    chunk = min(EPI_CHUNK, tr)
    assert tr % chunk == 0 and tr % 8 == 0

    # pack model weights along the lane axis -> one (F, NM*D) RHS, one (1, NM*D) bias
    w_packed = jnp.transpose(w, (1, 0, 2)).reshape(fx, NM * D)
    b_packed = jnp.transpose(b, (1, 0, 2)).reshape(1, NM * D)

    packed = pl.pallas_call(
        _make_kernel(tr, chunk),
        out_shape=jax.ShapeDtypeStruct((bx, 3 * D), jnp.float32),
        grid=(row_tiles,),
        in_specs=[
            pl.BlockSpec((tr, fx), lambda r: (r, 0)),          # x: tiled over rows
            pl.BlockSpec((fx, NM * D), lambda r: (0, 0)),      # packed weights: resident
            pl.BlockSpec((1, NM * D), lambda r: (0, 0)),       # packed bias: resident
        ],
        out_specs=pl.BlockSpec((tr, 3 * D), lambda r: (r, 0)), # mean | 5% | 95% packed
        compiler_params=pltpu.CompilerParams(
            dimension_semantics=("parallel",)),                # shards tiles across TCs on v7x
    )(x, w_packed, b_packed)

    # one cheap reshape of the single lane-dense output; per-head views are only for
    # fidelity with the module's dict-of-lists interface (consumers that can take the
    # packed (B, 3, NH, DH) array should use it directly).
    out3 = packed.reshape(bx, 3, NH, DH)
    mean3, lo3, hi3 = out3[:, 0], out3[:, 1], out3[:, 2]
    return {
        "predictions": [mean3[:, h] for h in range(NH)],
        "5%": [lo3[:, h] for h in range(NH)],
        "95%": [hi3[:, h] for h in range(NH)],
        "order": ["pd", "nd", "mod", "dlt"],
    }


def reference_forward(x, w, b):
    """Plain-JAX reference of the same math (eval mode, from_ll=False everywhere)."""
    outs = jnp.stack([jax.nn.sigmoid(x @ w[m] + b[m]) for m in range(NM)])  # (NM, B, D)
    preds = jnp.mean(outs[:NB], axis=0)
    lo = jnp.quantile(outs, CI, axis=0, method="linear")
    hi = jnp.quantile(outs, 1.0 - CI, axis=0, method="linear")

    def split(a):
        return [a[:, h * DH:(h + 1) * DH] for h in range(NH)]

    return {"predictions": split(preds), "5%": split(lo), "95%": split(hi),
            "order": ["pd", "nd", "mod", "dlt"]}


if __name__ == "__main__":
    key = jax.random.PRNGKey(0)
    kx, kw, kb = jax.random.split(key, 3)
    x = jax.random.normal(kx, (B, F), jnp.float32)
    bound = 1.0 / math.sqrt(F)
    w = jax.random.uniform(kw, (NM, F, D), jnp.float32, -bound, bound)
    b = jax.random.uniform(kb, (NM, 1, D), jnp.float32, -bound, bound)

    out = transition_ensemble_forward(x, w, b)
    out = jax.block_until_ready(out)

    ref = reference_forward(x, w, b)
    assert out["order"] == ["pd", "nd", "mod", "dlt"]
    for name in ("predictions", "5%", "95%"):
        for got, want in zip(out[name], ref[name]):
            assert got.shape == (B, DH), (name, got.shape)
            err = float(jnp.max(jnp.abs(got - want)))
            assert err < 1e-4, f"{name}: max abs err {err}"
    print("KERNEL_OK")
</pallas_src>

<mosaic_0001>
module attributes {stable_mosaic.version = 11 : i64} {
  func.func @kernel(%arg0: i32, %arg1: memref<128x32xf32, #tpu.memory_space<vmem>>, %arg2: memref<32x640xf32, #tpu.memory_space<vmem>>, %arg3: memref<1x640xf32, #tpu.memory_space<vmem>>, %arg4: memref<128x384xf32, #tpu.memory_space<vmem>>) attributes {dimension_semantics = [#tpu.dimension_semantics<parallel>], iteration_bounds = array<i64: 1>, scalar_prefetch = 0 : i64, scratch_operands = 0 : i64, tpu.core_type = #tpu.core_type<tc>, window_params = [{transform_indices = @transform_0, window_bounds = array<i64: 128, 32>}, {pipeline_mode = #tpu.pipeline_mode<synchronous>, transform_indices = @transform_1, window_bounds = array<i64: 32, 640>}, {pipeline_mode = #tpu.pipeline_mode<synchronous>, transform_indices = @transform_2, window_bounds = array<i64: 1, 640>}, {transform_indices = @transform_3, window_bounds = array<i64: 128, 384>}]} {
    %c0 = arith.constant 0 : index
    %c0_0 = arith.constant 0 : index
    %0 = vector.load %arg1[%c0, %c0_0] : memref<128x32xf32, #tpu.memory_space<vmem>>, vector<128x32xf32>
    %c0_1 = arith.constant 0 : index
    %c0_2 = arith.constant 0 : index
    %1 = vector.load %arg2[%c0_1, %c0_2] : memref<32x640xf32, #tpu.memory_space<vmem>>, vector<32x640xf32>
    %cst = arith.constant dense<0.000000e+00> : vector<128x640xf32>
    %2 = tpu.matmul %0, %1, %cst {dimension_numbers = #tpu.dot_dimension_numbers<[1], [0], [0], [1], [0, 0, 1, 1], [], []>} : vector<128x32xf32>, vector<32x640xf32>, vector<128x640xf32> -> vector<128x640xf32>
    %c0_3 = arith.constant 0 : index
    %c0_4 = arith.constant 0 : index
    %3 = vector.load %arg3[%c0_3, %c0_4] : memref<1x640xf32, #tpu.memory_space<vmem>>, vector<1x640xf32>
    %4 = vector.broadcast %3 : vector<1x640xf32> to vector<128x640xf32>
    %5 = arith.addf %2, %4 : vector<128x640xf32>
    %cst_5 = arith.constant 5.000000e-01 : f32
    %6 = vector.broadcast %cst_5 : f32 to vector<128x640xf32>
    %7 = arith.mulf %6, %5 : vector<128x640xf32>
    %8 = math.tanh %7 : vector<128x640xf32>
    %cst_6 = arith.constant 5.000000e-01 : f32
    %9 = vector.broadcast %cst_6 : f32 to vector<128x640xf32>
    %10 = arith.mulf %9, %8 : vector<128x640xf32>
    %cst_7 = arith.constant 5.000000e-01 : f32
    %11 = vector.broadcast %cst_7 : f32 to vector<128x640xf32>
    %12 = arith.addf %10, %11 : vector<128x640xf32>
    %13 = vector.extract_strided_slice %12 {offsets = [0, 0], sizes = [32, 640], strides = [1, 1]} : vector<128x640xf32> to vector<32x640xf32>
    %14 = vector.extract_strided_slice %13 {offsets = [0, 0], sizes = [32, 128], strides = [1, 1]} : vector<32x640xf32> to vector<32x128xf32>
    %15 = vector.extract_strided_slice %13 {offsets = [0, 128], sizes = [32, 128], strides = [1, 1]} : vector<32x640xf32> to vector<32x128xf32>
    %16 = vector.extract_strided_slice %13 {offsets = [0, 256], sizes = [32, 128], strides = [1, 1]} : vector<32x640xf32> to vector<32x128xf32>
    %17 = vector.extract_strided_slice %13 {offsets = [0, 384], sizes = [32, 128], strides = [1, 1]} : vector<32x640xf32> to vector<32x128xf32>
    %18 = vector.extract_strided_slice %13 {offsets = [0, 512], sizes = [32, 128], strides = [1, 1]} : vector<32x640xf32> to vector<32x128xf32>
    %19 = arith.addf %14, %15 : vector<32x128xf32>
    %20 = arith.addf %19, %16 : vector<32x128xf32>
    %cst_8 = arith.constant 0.333333343 : f32
    %21 = vector.broadcast %cst_8 : f32 to vector<32x128xf32>
    %22 = arith.mulf %20, %21 : vector<32x128xf32>
    %c0_9 = arith.constant 0 : index
    %c0_10 = arith.constant 0 : index
    %23 = vector.load %arg4[%c0_9, %c0_10] : memref<128x384xf32, #tpu.memory_space<vmem>>, vector<32x128xf32>
    tpu.vector_store %arg4[%c0_9, %c0_10], %22 {strides = array<i32>} : memref<128x384xf32, #tpu.memory_space<vmem>>, vector<32x128xf32>,
    %24 = arith.minimumf %14, %15 : vector<32x128xf32>
    %25 = arith.maximumf %14, %15 : vector<32x128xf32>
    %26 = arith.minimumf %16, %17 : vector<32x128xf32>
    %27 = arith.maximumf %16, %17 : vector<32x128xf32>
    %28 = arith.minimumf %25, %26 : vector<32x128xf32>
    %29 = arith.maximumf %25, %26 : vector<32x128xf32>
    %30 = arith.minimumf %27, %18 : vector<32x128xf32>
    %31 = arith.maximumf %27, %18 : vector<32x128xf32>
    %32 = arith.minimumf %24, %28 : vector<32x128xf32>
    %33 = arith.maximumf %24, %28 : vector<32x128xf32>
    %34 = arith.minimumf %29, %30 : vector<32x128xf32>
    %35 = arith.maximumf %29, %30 : vector<32x128xf32>
    %36 = arith.minimumf %33, %34 : vector<32x128xf32>
    %37 = arith.maximumf %33, %34 : vector<32x128xf32>
    %38 = arith.minimumf %35, %31 : vector<32x128xf32>
    %39 = arith.maximumf %35, %31 : vector<32x128xf32>
    %40 = arith.minimumf %32, %36 : vector<32x128xf32>
    %41 = arith.maximumf %32, %36 : vector<32x128xf32>
    %42 = arith.maximumf %37, %38 : vector<32x128xf32>
    %43 = arith.subf %41, %40 : vector<32x128xf32>
    %cst_11 = arith.constant 4.000000e-01 : f32
    %44 = vector.broadcast %cst_11 : f32 to vector<32x128xf32>
    %45 = arith.mulf %44, %43 : vector<32x128xf32>
    %46 = arith.addf %40, %45 : vector<32x128xf32>
    %c0_12 = arith.constant 0 : index
    %c128 = arith.constant 128 : index
    %47 = vector.load %arg4[%c0_12, %c128] : memref<128x384xf32, #tpu.memory_space<vmem>>, vector<32x128xf32>
    tpu.vector_store %arg4[%c0_12, %c128], %46 {strides = array<i32>} : memref<128x384xf32, #tpu.memory_space<vmem>>, vector<32x128xf32>,
    %48 = arith.subf %39, %42 : vector<32x128xf32>
    %cst_13 = arith.constant 6.000000e-01 : f32
    %49 = vector.broadcast %cst_13 : f32 to vector<32x128xf32>
    %50 = arith.mulf %49, %48 : vector<32x128xf32>
    %51 = arith.addf %42, %50 : vector<32x128xf32>
    %c0_14 = arith.constant 0 : index
    %c256 = arith.constant 256 : index
    %52 = vector.load %arg4[%c0_14, %c256] : memref<128x384xf32, #tpu.memory_space<vmem>>, vector<32x128xf32>
    tpu.vector_store %arg4[%c0_14, %c256], %51 {strides = array<i32>} : memref<128x384xf32, #tpu.memory_space<vmem>>, vector<32x128xf32>,
    %53 = vector.extract_strided_slice %12 {offsets = [32, 0], sizes = [32, 640], strides = [1, 1]} : vector<128x640xf32> to vector<32x640xf32>
    %54 = vector.extract_strided_slice %53 {offsets = [0, 0], sizes = [32, 128], strides = [1, 1]} : vector<32x640xf32> to vector<32x128xf32>
    %55 = vector.extract_strided_slice %53 {offsets = [0, 128], sizes = [32, 128], strides = [1, 1]} : vector<32x640xf32> to vector<32x128xf32>
    %56 = vector.extract_strided_slice %53 {offsets = [0, 256], sizes = [32, 128], strides = [1, 1]} : vector<32x640xf32> to vector<32x128xf32>
    %57 = vector.extract_strided_slice %53 {offsets = [0, 384], sizes = [32, 128], strides = [1, 1]} : vector<32x640xf32> to vector<32x128xf32>
    %58 = vector.extract_strided_slice %53 {offsets = [0, 512], sizes = [32, 128], strides = [1, 1]} : vector<32x640xf32> to vector<32x128xf32>
    %59 = arith.addf %54, %55 : vector<32x128xf32>
    %60 = arith.addf %59, %56 : vector<32x128xf32>
    %cst_15 = arith.constant 0.333333343 : f32
    %61 = vector.broadcast %cst_15 : f32 to vector<32x128xf32>
    %62 = arith.mulf %60, %61 : vector<32x128xf32>
    %c32 = arith.constant 32 : index
    %c0_16 = arith.constant 0 : index
    %63 = vector.load %arg4[%c32, %c0_16] : memref<128x384xf32, #tpu.memory_space<vmem>>, vector<32x128xf32>
    tpu.vector_store %arg4[%c32, %c0_16], %62 {strides = array<i32>} : memref<128x384xf32, #tpu.memory_space<vmem>>, vector<32x128xf32>,
    %64 = arith.minimumf %54, %55 : vector<32x128xf32>
    %65 = arith.maximumf %54, %55 : vector<32x128xf32>
    %66 = arith.minimumf %56, %57 : vector<32x128xf32>
    %67 = arith.maximumf %56, %57 : vector<32x128xf32>
    %68 = arith.minimumf %65, %66 : vector<32x128xf32>
    %69 = arith.maximumf %65, %66 : vector<32x128xf32>
    %70 = arith.minimumf %67, %58 : vector<32x128xf32>
    %71 = arith.maximumf %67, %58 : vector<32x128xf32>
    %72 = arith.minimumf %64, %68 : vector<32x128xf32>
    %73 = arith.maximumf %64, %68 : vector<32x128xf32>
    %74 = arith.minimumf %69, %70 : vector<32x128xf32>
    %75 = arith.maximumf %69, %70 : vector<32x128xf32>
    %76 = arith.minimumf %73, %74 : vector<32x128xf32>
    %77 = arith.maximumf %73, %74 : vector<32x128xf32>
    %78 = arith.minimumf %75, %71 : vector<32x128xf32>
    %79 = arith.maximumf %75, %71 : vector<32x128xf32>
    %80 = arith.minimumf %72, %76 : vector<32x128xf32>
    %81 = arith.maximumf %72, %76 : vector<32x128xf32>
    %82 = arith.maximumf %77, %78 : vector<32x128xf32>
    %83 = arith.subf %81, %80 : vector<32x128xf32>
    %cst_17 = arith.constant 4.000000e-01 : f32
    %84 = vector.broadcast %cst_17 : f32 to vector<32x128xf32>
    %85 = arith.mulf %84, %83 : vector<32x128xf32>
    %86 = arith.addf %80, %85 : vector<32x128xf32>
    %c32_18 = arith.constant 32 : index
    %c128_19 = arith.constant 128 : index
    %87 = vector.load %arg4[%c32_18, %c128_19] : memref<128x384xf32, #tpu.memory_space<vmem>>, vector<32x128xf32>
    tpu.vector_store %arg4[%c32_18, %c128_19], %86 {strides = array<i32>} : memref<128x384xf32, #tpu.memory_space<vmem>>, vector<32x128xf32>,
    %88 = arith.subf %79, %82 : vector<32x128xf32>
    %cst_20 = arith.constant 6.000000e-01 : f32
    %89 = vector.broadcast %cst_20 : f32 to vector<32x128xf32>
    %90 = arith.mulf %89, %88 : vector<32x128xf32>
    %91 = arith.addf %82, %90 : vector<32x128xf32>
    %c32_21 = arith.constant 32 : index
    %c256_22 = arith.constant 256 : index
    %92 = vector.load %arg4[%c32_21, %c256_22] : memref<128x384xf32, #tpu.memory_space<vmem>>, vector<32x128xf32>
    tpu.vector_store %arg4[%c32_21, %c256_22], %91 {strides = array<i32>} : memref<128x384xf32, #tpu.memory_space<vmem>>, vector<32x128xf32>,
    %93 = vector.extract_strided_slice %12 {offsets = [64, 0], sizes = [32, 640], strides = [1, 1]} : vector<128x640xf32> to vector<32x640xf32>
    %94 = vector.extract_strided_slice %93 {offsets = [0, 0], sizes = [32, 128], strides = [1, 1]} : vector<32x640xf32> to vector<32x128xf32>
    %95 = vector.extract_strided_slice %93 {offsets = [0, 128], sizes = [32, 128], strides = [1, 1]} : vector<32x640xf32> to vector<32x128xf32>
    %96 = vector.extract_strided_slice %93 {offsets = [0, 256], sizes = [32, 128], strides = [1, 1]} : vector<32x640xf32> to vector<32x128xf32>
    %97 = vector.extract_strided_slice %93 {offsets = [0, 384], sizes = [32, 128], strides = [1, 1]} : vector<32x640xf32> to vector<32x128xf32>
    %98 = vector.extract_strided_slice %93 {offsets = [0, 512], sizes = [32, 128], strides = [1, 1]} : vector<32x640xf32> to vector<32x128xf32>
    %99 = arith.addf %94, %95 : vector<32x128xf32>
    %100 = arith.addf %99, %96 : vector<32x128xf32>
    %cst_23 = arith.constant 0.333333343 : f32
    %101 = vector.broadcast %cst_23 : f32 to vector<32x128xf32>
    %102 = arith.mulf %100, %101 : vector<32x128xf32>
    %c64 = arith.constant 64 : index
    %c0_24 = arith.constant 0 : index
    %103 = vector.load %arg4[%c64, %c0_24] : memref<128x384xf32, #tpu.memory_space<vmem>>, vector<32x128xf32>
    tpu.vector_store %arg4[%c64, %c0_24], %102 {strides = array<i32>} : memref<128x384xf32, #tpu.memory_space<vmem>>, vector<32x128xf32>,
    %104 = arith.minimumf %94, %95 : vector<32x128xf32>
    %105 = arith.maximumf %94, %95 : vector<32x128xf32>
    %106 = arith.minimumf %96, %97 : vector<32x128xf32>
    %107 = arith.maximumf %96, %97 : vector<32x128xf32>
    %108 = arith.minimumf %105, %106 : vector<32x128xf32>
    %109 = arith.maximumf %105, %106 : vector<32x128xf32>
    %110 = arith.minimumf %107, %98 : vector<32x128xf32>
    %111 = arith.maximumf %107, %98 : vector<32x128xf32>
    %112 = arith.minimumf %104, %108 : vector<32x128xf32>
    %113 = arith.maximumf %104, %108 : vector<32x128xf32>
    %114 = arith.minimumf %109, %110 : vector<32x128xf32>
    %115 = arith.maximumf %109, %110 : vector<32x128xf32>
    %116 = arith.minimumf %113, %114 : vector<32x128xf32>
    %117 = arith.maximumf %113, %114 : vector<32x128xf32>
    %118 = arith.minimumf %115, %111 : vector<32x128xf32>
    %119 = arith.maximumf %115, %111 : vector<32x128xf32>
    %120 = arith.minimumf %112, %116 : vector<32x128xf32>
    %121 = arith.maximumf %112, %116 : vector<32x128xf32>
    %122 = arith.maximumf %117, %118 : vector<32x128xf32>
    %123 = arith.subf %121, %120 : vector<32x128xf32>
    %cst_25 = arith.constant 4.000000e-01 : f32
    %124 = vector.broadcast %cst_25 : f32 to vector<32x128xf32>
    %125 = arith.mulf %124, %123 : vector<32x128xf32>
    %126 = arith.addf %120, %125 : vector<32x128xf32>
    %c64_26 = arith.constant 64 : index
    %c128_27 = arith.constant 128 : index
    %127 = vector.load %arg4[%c64_26, %c128_27] : memref<128x384xf32, #tpu.memory_space<vmem>>, vector<32x128xf32>
    tpu.vector_store %arg4[%c64_26, %c128_27], %126 {strides = array<i32>} : memref<128x384xf32, #tpu.memory_space<vmem>>, vector<32x128xf32>,
    %128 = arith.subf %119, %122 : vector<32x128xf32>
    %cst_28 = arith.constant 6.000000e-01 : f32
    %129 = vector.broadcast %cst_28 : f32 to vector<32x128xf32>
    %130 = arith.mulf %129, %128 : vector<32x128xf32>
    %131 = arith.addf %122, %130 : vector<32x128xf32>
    %c64_29 = arith.constant 64 : index
    %c256_30 = arith.constant 256 : index
    %132 = vector.load %arg4[%c64_29, %c256_30] : memref<128x384xf32, #tpu.memory_space<vmem>>, vector<32x128xf32>
    tpu.vector_store %arg4[%c64_29, %c256_30], %131 {strides = array<i32>} : memref<128x384xf32, #tpu.memory_space<vmem>>, vector<32x128xf32>,
    %133 = vector.extract_strided_slice %12 {offsets = [96, 0], sizes = [32, 640], strides = [1, 1]} : vector<128x640xf32> to vector<32x640xf32>
    %134 = vector.extract_strided_slice %133 {offsets = [0, 0], sizes = [32, 128], strides = [1, 1]} : vector<32x640xf32> to vector<32x128xf32>
    %135 = vector.extract_strided_slice %133 {offsets = [0, 128], sizes = [32, 128], strides = [1, 1]} : vector<32x640xf32> to vector<32x128xf32>
    %136 = vector.extract_strided_slice %133 {offsets = [0, 256], sizes = [32, 128], strides = [1, 1]} : vector<32x640xf32> to vector<32x128xf32>
    %137 = vector.extract_strided_slice %133 {offsets = [0, 384], sizes = [32, 128], strides = [1, 1]} : vector<32x640xf32> to vector<32x128xf32>
    %138 = vector.extract_strided_slice %133 {offsets = [0, 512], sizes = [32, 128], strides = [1, 1]} : vector<32x640xf32> to vector<32x128xf32>
    %139 = arith.addf %134, %135 : vector<32x128xf32>
    %140 = arith.addf %139, %136 : vector<32x128xf32>
    %cst_31 = arith.constant 0.333333343 : f32
    %141 = vector.broadcast %cst_31 : f32 to vector<32x128xf32>
    %142 = arith.mulf %140, %141 : vector<32x128xf32>
    %c96 = arith.constant 96 : index
    %c0_32 = arith.constant 0 : index
    %143 = vector.load %arg4[%c96, %c0_32] : memref<128x384xf32, #tpu.memory_space<vmem>>, vector<32x128xf32>
    tpu.vector_store %arg4[%c96, %c0_32], %142 {strides = array<i32>} : memref<128x384xf32, #tpu.memory_space<vmem>>, vector<32x128xf32>,
    %144 = arith.minimumf %134, %135 : vector<32x128xf32>
    %145 = arith.maximumf %134, %135 : vector<32x128xf32>
    %146 = arith.minimumf %136, %137 : vector<32x128xf32>
    %147 = arith.maximumf %136, %137 : vector<32x128xf32>
    %148 = arith.minimumf %145, %146 : vector<32x128xf32>
    %149 = arith.maximumf %145, %146 : vector<32x128xf32>
    %150 = arith.minimumf %147, %138 : vector<32x128xf32>
    %151 = arith.maximumf %147, %138 : vector<32x128xf32>
    %152 = arith.minimumf %144, %148 : vector<32x128xf32>
    %153 = arith.maximumf %144, %148 : vector<32x128xf32>
    %154 = arith.minimumf %149, %150 : vector<32x128xf32>
    %155 = arith.maximumf %149, %150 : vector<32x128xf32>
    %156 = arith.minimumf %153, %154 : vector<32x128xf32>
    %157 = arith.maximumf %153, %154 : vector<32x128xf32>
    %158 = arith.minimumf %155, %151 : vector<32x128xf32>
    %159 = arith.maximumf %155, %151 : vector<32x128xf32>
    %160 = arith.minimumf %152, %156 : vector<32x128xf32>
    %161 = arith.maximumf %152, %156 : vector<32x128xf32>
    %162 = arith.maximumf %157, %158 : vector<32x128xf32>
    %163 = arith.subf %161, %160 : vector<32x128xf32>
    %cst_33 = arith.constant 4.000000e-01 : f32
    %164 = vector.broadcast %cst_33 : f32 to vector<32x128xf32>
    %165 = arith.mulf %164, %163 : vector<32x128xf32>
    %166 = arith.addf %160, %165 : vector<32x128xf32>
    %c96_34 = arith.constant 96 : index
    %c128_35 = arith.constant 128 : index
    %167 = vector.load %arg4[%c96_34, %c128_35] : memref<128x384xf32, #tpu.memory_space<vmem>>, vector<32x128xf32>
    tpu.vector_store %arg4[%c96_34, %c128_35], %166 {strides = array<i32>} : memref<128x384xf32, #tpu.memory_space<vmem>>, vector<32x128xf32>,
    %168 = arith.subf %159, %162 : vector<32x128xf32>
    %cst_36 = arith.constant 6.000000e-01 : f32
    %169 = vector.broadcast %cst_36 : f32 to vector<32x128xf32>
    %170 = arith.mulf %169, %168 : vector<32x128xf32>
    %171 = arith.addf %162, %170 : vector<32x128xf32>
    %c96_37 = arith.constant 96 : index
    %c256_38 = arith.constant 256 : index
    %172 = vector.load %arg4[%c96_37, %c256_38] : memref<128x384xf32, #tpu.memory_space<vmem>>, vector<32x128xf32>
    tpu.vector_store %arg4[%c96_37, %c256_38], %171 {strides = array<i32>} : memref<128x384xf32, #tpu.memory_space<vmem>>, vector<32x128xf32>,
    return
  }
  func.func @transform_0(%arg0: i32) -> (i32, i32) {
    %c0_i32 = arith.constant 0 : i32
    %c0_i32_0 = arith.constant 0 : i32
    return %arg0, %c0_i32 : i32, i32
  }
  func.func @transform_1(%arg0: i32) -> (i32, i32) {
    %c0_i32 = arith.constant 0 : i32
    %c0_i32_0 = arith.constant 0 : i32
    %c0_i32_1 = arith.constant 0 : i32
    return %c0_i32, %c0_i32_0 : i32, i32
  }
  func.func @transform_2(%arg0: i32) -> (i32, i32) {
    %c0_i32 = arith.constant 0 : i32
    %c0_i32_0 = arith.constant 0 : i32
    %c0_i32_1 = arith.constant 0 : i32
    return %c0_i32, %c0_i32_0 : i32, i32
  }
  func.func @transform_3(%arg0: i32) -> (i32, i32) {
    %c0_i32 = arith.constant 0 : i32
    %c0_i32_0 = arith.constant 0 : i32
    return %arg0, %c0_i32 : i32, i32
  }
}

</mosaic_0001>

<llo_original>
// kernel: tpu_custom_call.1
$region0: #{tpu_custom_call.1}
  #allocation0 [shape = 'u32[]', space=smem, size = 0x4, offset = 0x4, fixed_abs, tag = 'smem constant byte address 0x4 - core index']
  #allocation1 [shape = 'u32[144,128]{1,0:T(1,128)}', space=vmem, size = 0x12000, scoped, tag = 'internal scratch']
  %s0 = inlined_call_operand.vmem [shape: f32[128,32], index: 0, kind: input, shape index: {}]
  %s1 = inlined_call_operand.vmem [shape: f32[32,640], index: 1, kind: input, shape index: {}]
  %s2 = inlined_call_operand.hbm [shape: f32[1,640], index: 2, kind: input, shape index: {}]
  %s3 = inlined_call_operand.hbm [shape: f32[128,384], index: 3, kind: output, shape index: {}]
  %s4 = sld [smem:[#allocation0]]
  $region26: #{tpu_custom_call.1} parent=0
    _
  %s6 = ssub.s32 1, %s4
  %s7 = scalar_select 0, %s6, %s4
  $region1: #{tpu_custom_call.1} parent=0
    #allocation2 [shape = 'u8[2560]{0}', space=vmem, size = 0xc00, scoped, tag = 'input window, operand 2, single buffered']
    #allocation3 [shape = 's32[1]{0}', space=sflag, size = 0x4, scoped, tag = 'scoped memory for tpu_custom_call.1']
    #allocation4 [shape = 's32[1]{0}', space=sflag, size = 0x4, scoped, tag = 'scoped memory for tpu_custom_call.1']
    #allocation5 [shape = 'u8[196608]{0}', space=vmem, size = 0x30000, scoped, tag = 'output window, operand 0, single buffered']
    %8 = vsyncpa [#allocation3], 0
    %9 = vsyncpa [#allocation4], 0
    // Predicated region
    $region2: #{tpu_custom_call.1} parent=1 // pred_check
      _
    $region3: #{tpu_custom_call.1} parent=1 // pred_check_branch
      %11 = sbr.rel (0) target = $region5
    $region4: #{tpu_custom_call.1} parent=1 // pred_region
      _
    $region5: #{tpu_custom_call.1} parent=1 // pred_fallthru
      _
    // Predicated region
    $region6: #{tpu_custom_call.1} parent=1 // pred_check
      _
    $region7: #{tpu_custom_call.1} parent=1 // pred_check_branch
      %13 = sbr.rel (0) target = $region9
    $region8: #{tpu_custom_call.1} parent=1 // pred_region
      _
    $region9: #{tpu_custom_call.1} parent=1 // pred_fallthru
      _
    // Predicated region
    $region10: #{tpu_custom_call.1} parent=1 // pred_check
      _
    $region11: #{tpu_custom_call.1} parent=1 // pred_check_branch
      %15 = sbr.rel (0) target = $region13
    $region12: #{tpu_custom_call.1} parent=1 // pred_region
      %s17 = ssub.s32 80, 80
      %18 = vsyncadd [#allocation3], %s17
      %s20 = sshll.u32 [#allocation2], 4
      %s21 = int_to_ptr.vmem [resolvable:$true] %s20
      %23 = dma.hbm_to_vmem [thread:$0]  %s2, 80, %s21, [#allocation3]
    $region13: #{tpu_custom_call.1} parent=1 // pred_fallthru
      _
    // Predicated region
    $region14: #{tpu_custom_call.1} parent=1 // pred_check
      _
    $region15: #{tpu_custom_call.1} parent=1 // pred_check_branch
      %25 = sbr.rel (0) target = $region17
    $region16: #{tpu_custom_call.1} parent=1 // pred_region
      %26 = dma.done [#allocation3], 80
    $region17: #{tpu_custom_call.1} parent=1 // pred_fallthru
      _
    %v27 = vld [vmem:[%s0] sm:$0xff]
    %v28 = vld [vmem:[%s0 + $0x8] sm:$0xff]
    %v29 = vld [vmem:[%s0 + $0x10] sm:$0xff]
    %v30 = vld [vmem:[%s0 + $0x18] sm:$0xff]
    %v31 = vld [vmem:[%s0 + $0x20] sm:$0xff]
    %v32 = vld [vmem:[%s0 + $0x28] sm:$0xff]
    %v33 = vld [vmem:[%s0 + $0x30] sm:$0xff]
    %v34 = vld [vmem:[%s0 + $0x38] sm:$0xff]
    %v35 = vld [vmem:[%s0 + $0x40] sm:$0xff]
    %v36 = vld [vmem:[%s0 + $0x48] sm:$0xff]
    %v37 = vld [vmem:[%s0 + $0x50] sm:$0xff]
    %v38 = vld [vmem:[%s0 + $0x58] sm:$0xff]
    %v39 = vld [vmem:[%s0 + $0x60] sm:$0xff]
    %v40 = vld [vmem:[%s0 + $0x68] sm:$0xff]
    %v41 = vld [vmem:[%s0 + $0x70] sm:$0xff]
    %v42 = vld [vmem:[%s0 + $0x78] sm:$0xff]
    %v43 = vld [vmem:[%s1] sm:$0xff]
    %v44 = vld [vmem:[%s1 + $0x8] sm:$0xff]
    %v45 = vld [vmem:[%s1 + $0x10] sm:$0xff]
    %v46 = vld [vmem:[%s1 + $0x18] sm:$0xff]
    %v47 = vld [vmem:[%s1 + $0x20] sm:$0xff]
    %v48 = vld [vmem:[%s1 + $0x28] sm:$0xff]
    %v49 = vld [vmem:[%s1 + $0x30] sm:$0xff]
    %v50 = vld [vmem:[%s1 + $0x38] sm:$0xff]
    %v51 = vld [vmem:[%s1 + $0x40] sm:$0xff]
    %v52 = vld [vmem:[%s1 + $0x48] sm:$0xff]
    %v53 = vld [vmem:[%s1 + $0x50] sm:$0xff]
    %v54 = vld [vmem:[%s1 + $0x58] sm:$0xff]
    %v55 = vld [vmem:[%s1 + $0x60] sm:$0xff]
    %v56 = vld [vmem:[%s1 + $0x68] sm:$0xff]
    %v57 = vld [vmem:[%s1 + $0x70] sm:$0xff]
    %v58 = vld [vmem:[%s1 + $0x78] sm:$0xff]
    %v59 = vld [vmem:[%s1 + $0x80] sm:$0xff]
    %v60 = vld [vmem:[%s1 + $0x88] sm:$0xff]
    %v61 = vld [vmem:[%s1 + $0x90] sm:$0xff]
    %v62 = vld [vmem:[%s1 + $0x98] sm:$0xff]
    %v63 = vld [vmem:[#allocation2] sm:$0x1f]
    %v65 = vlaneseq
    %v66 = vshrl.u32 %v65, 7
    %v67 = vsub.s32 0, %v66
    %v68 = vrot.slane %v63, %v67
    %v69 = vlaneseq
    %v70 = vshrl.u32 %v69, 7
    %v71 = vsub.s32 1, %v70
    %v72 = vrot.slane %v63, %v71
    %v73 = vlaneseq
    %v74 = vshrl.u32 %v73, 7
    %v75 = vsub.s32 2, %v74
    %v76 = vrot.slane %v63, %v75
    %v77 = vlaneseq
    %v78 = vshrl.u32 %v77, 7
    %v79 = vsub.s32 3, %v78
    %v80 = vrot.slane %v63, %v79
    %v81 = vlaneseq
    %v82 = vshrl.u32 %v81, 7
    %v83 = vsub.s32 4, %v82
    %v84 = vrot.slane %v63, %v83
    %vm90 = vcmask 261120
    %v92 = vsel %vm90, %v27, 0
    %v95 = vsel %vm90, %v28, 0
    %v98 = vsel %vm90, %v29, 0
    %v101 = vsel %vm90, %v30, 0
    %v104 = vsel %vm90, %v31, 0
    %v107 = vsel %vm90, %v32, 0
    %v110 = vsel %vm90, %v33, 0
    %v113 = vsel %vm90, %v34, 0
    %v116 = vsel %vm90, %v35, 0
    %v119 = vsel %vm90, %v36, 0
    %v122 = vsel %vm90, %v37, 0
    %v125 = vsel %vm90, %v38, 0
    %v128 = vsel %vm90, %v39, 0
    %v131 = vsel %vm90, %v40, 0
    %v134 = vsel %vm90, %v41, 0
    %v137 = vsel %vm90, %v42, 0
    %139 = vmatprep.subr.mxu0 0.0
    %140 = vmatpush1.msra.mxu0 0.0
    %141 = vmatprep.subr.mxu0 0.0
    %142 = vmatpush1.msra.mxu0 0.0
    %143 = vmatprep.subr.mxu0 0.0
    %144 = vmatpush1.msra.mxu0 0.0
    %145 = vmatprep.subr.mxu0 0.0
    %146 = vmatpush1.msra.mxu0 0.0
    %147 = vmatprep.subr.mxu0 0.0
    %148 = vmatpush1.msra.mxu0 0.0
    %149 = vmatprep.subr.mxu0 0.0
    %150 = vmatpush1.msra.mxu0 0.0
    %151 = vmatprep.subr.mxu0 0.0
    %152 = vmatpush1.msra.mxu0 0.0
    %153 = vmatprep.subr.mxu0 0.0
    %154 = vmatpush1.msra.mxu0 0.0
    %155 = vmatprep.subr.mxu0 0.0
    %156 = vmatpush1.msra.mxu0 0.0
    %157 = vmatprep.subr.mxu0 0.0
    %158 = vmatpush1.msra.mxu0 0.0
    %159 = vmatprep.subr.mxu0 0.0
    %160 = vmatpush1.msra.mxu0 0.0
    %161 = vmatprep.subr.mxu0 0.0
    %162 = vmatpush1.msra.mxu0 0.0
    %163 = vmatprep.subr.mxu0 %v59
    %164 = vmatpush1.msra.mxu0 %v58
    %165 = vmatprep.subr.mxu0 %v54
    %166 = vmatpush1.msra.mxu0 %v53
    %167 = vmatprep.subr.mxu0 %v49
    %168 = vmatpush1.msra.mxu0 %v48
    %169 = vmatprep.subr.mxu0 %v44
    %170 = vmatpush1.msra.mxu0 %v43
    %171 = vmatprep.subr.mxu0 0.0
    %172 = vmatpush2.msra.mxu0 0.0
    %173 = vmatprep.subr.mxu0 0.0
    %174 = vmatpush2.msra.mxu0 0.0
    %175 = vmatprep.subr.mxu0 0.0
    %176 = vmatpush2.msra.mxu0 0.0
    %177 = vmatprep.subr.mxu0 0.0
    %178 = vmatpush2.msra.mxu0 0.0
    %179 = vmatprep.subr.mxu0 0.0
    %180 = vmatpush2.msra.mxu0 0.0
    %181 = vmatprep.subr.mxu0 0.0
    %182 = vmatpush2.msra.mxu0 0.0
    %183 = vmatprep.subr.mxu0 0.0
    %184 = vmatpush2.msra.mxu0 0.0
    %185 = vmatprep.subr.mxu0 0.0
    %186 = vmatpush2.msra.mxu0 0.0
    %187 = vmatprep.subr.mxu0 0.0
    %188 = vmatpush2.msra.mxu0 0.0
    %189 = vmatprep.subr.mxu0 0.0
    %190 = vmatpush2.msra.mxu0 0.0
    %191 = vmatprep.subr.mxu0 0.0
    %192 = vmatpush2.msra.mxu0 0.0
    %193 = vmatprep.subr.mxu0 0.0
    %194 = vmatpush2.msra.mxu0 0.0
    %195 = vmatprep.subr.mxu0 0.0
    %196 = vmatpush2.msra.mxu0 0.0
    %197 = vmatprep.subr.mxu0 0.0
    %198 = vmatpush2.msra.mxu0 0.0
    %199 = vmatprep.subr.mxu0 0.0
    %200 = vmatpush2.msra.mxu0 0.0
    %201 = vmatprep.subr.mxu0 0.0
    %202 = vmatpush2.msra.mxu0 0.0
    %203 = vmatprep.mubr.f32.mxu0 0.0
    %204 = vmatmul.mubr.f32.gmra.mxu0 %v92
    %v205 = vpop.f32.mrf.mxu0
    %v206 = vadd.f32 %v68, %v205
    %v207 = vpop.f32.mrf.mxu0
    %v208 = vadd.f32 %v72, %v207
    %209 = vmatprep.mubr.f32.mxu0 0.0
    %210 = vmatmul.mubr.f32.gmra.mxu0 %v95
    %v211 = vpop.f32.mrf.mxu0
    %v212 = vadd.f32 %v68, %v211
    %v213 = vpop.f32.mrf.mxu0
    %v214 = vadd.f32 %v72, %v213
    %215 = vmatprep.mubr.f32.mxu0 0.0
    %216 = vmatmul.mubr.f32.gmra.mxu0 %v98
    %v217 = vpop.f32.mrf.mxu0
    %v218 = vadd.f32 %v68, %v217
    %v219 = vpop.f32.mrf.mxu0
    %v220 = vadd.f32 %v72, %v219
    %221 = vmatprep.mubr.f32.mxu0 0.0
    %222 = vmatmul.mubr.f32.gmra.mxu0 %v101
    %v223 = vpop.f32.mrf.mxu0
    %v224 = vadd.f32 %v68, %v223
    %v225 = vpop.f32.mrf.mxu0
    %v226 = vadd.f32 %v72, %v225
    %227 = vmatprep.mubr.f32.mxu0 0.0
    %228 = vmatmul.mubr.f32.gmra.mxu0 %v104
    %v229 = vpop.f32.mrf.mxu0
    %v230 = vadd.f32 %v68, %v229
    %v231 = vpop.f32.mrf.mxu0
    %v232 = vadd.f32 %v72, %v231
    %233 = vmatprep.mubr.f32.mxu0 0.0
    %234 = vmatmul.mubr.f32.gmra.mxu0 %v107
    %v235 = vpop.f32.mrf.mxu0
    %v236 = vadd.f32 %v68, %v235
    %v237 = vpop.f32.mrf.mxu0
    %v238 = vadd.f32 %v72, %v237
    %239 = vmatprep.mubr.f32.mxu0 0.0
    %240 = vmatmul.mubr.f32.gmra.mxu0 %v110
    %v241 = vpop.f32.mrf.mxu0
    %v242 = vadd.f32 %v68, %v241
    %v243 = vpop.f32.mrf.mxu0
    %v244 = vadd.f32 %v72, %v243
    %245 = vmatprep.mubr.f32.mxu0 0.0
    %246 = vmatmul.mubr.f32.gmra.mxu0 %v113
    %v247 = vpop.f32.mrf.mxu0
    %v248 = vadd.f32 %v68, %v247
    %v249 = vpop.f32.mrf.mxu0
    %v250 = vadd.f32 %v72, %v249
    %251 = vmatprep.mubr.f32.mxu0 0.0
    %252 = vmatmul.mubr.f32.gmra.mxu0 %v116
    %v253 = vpop.f32.mrf.mxu0
    %v254 = vadd.f32 %v68, %v253
    %v255 = vpop.f32.mrf.mxu0
    %v256 = vadd.f32 %v72, %v255
    %257 = vmatprep.mubr.f32.mxu0 0.0
    %258 = vmatmul.mubr.f32.gmra.mxu0 %v119
    %v259 = vpop.f32.mrf.mxu0
    %v260 = vadd.f32 %v68, %v259
    %v261 = vpop.f32.mrf.mxu0
    %v262 = vadd.f32 %v72, %v261
    %263 = vmatprep.mubr.f32.mxu0 0.0
    %264 = vmatmul.mubr.f32.gmra.mxu0 %v122
    %v265 = vpop.f32.mrf.mxu0
    %v266 = vadd.f32 %v68, %v265
    %v267 = vpop.f32.mrf.mxu0
    %v268 = vadd.f32 %v72, %v267
    %269 = vmatprep.mubr.f32.mxu0 0.0
    %270 = vmatmul.mubr.f32.gmra.mxu0 %v125
    %v271 = vpop.f32.mrf.mxu0
    %v272 = vadd.f32 %v68, %v271
    %v273 = vpop.f32.mrf.mxu0
    %v274 = vadd.f32 %v72, %v273
    %275 = vmatprep.mubr.f32.mxu0 0.0
    %276 = vmatmul.mubr.f32.gmra.mxu0 %v128
    %v277 = vpop.f32.mrf.mxu0
    %v278 = vadd.f32 %v68, %v277
    %v279 = vpop.f32.mrf.mxu0
    %v280 = vadd.f32 %v72, %v279
    %281 = vmatprep.mubr.f32.mxu0 0.0
    %282 = vmatmul.mubr.f32.gmra.mxu0 %v131
    %v283 = vpop.f32.mrf.mxu0
    %v284 = vadd.f32 %v68, %v283
    %v285 = vpop.f32.mrf.mxu0
    %v286 = vadd.f32 %v72, %v285
    %287 = vmatprep.mubr.f32.mxu0 0.0
    %288 = vmatmul.mubr.f32.gmra.mxu0 %v134
    %v289 = vpop.f32.mrf.mxu0
    %v290 = vadd.f32 %v68, %v289
    %v291 = vpop.f32.mrf.mxu0
    %v292 = vadd.f32 %v72, %v291
    %293 = vmatprep.mubr.f32.mxu0 0.0
    %294 = vmatmul.mubr.f32.gmra.mxu0 %v137
    %v295 = vpop.f32.mrf.mxu0
    %v296 = vadd.f32 %v68, %v295
    %v297 = vpop.f32.mrf.mxu0
    %v298 = vadd.f32 %v72, %v297
    %299 = vdwg.mxu0
    %300 = vmatprep.subr.mxu0 0.0
    %301 = vmatpush1.msra.mxu0 0.0
    %302 = vmatprep.subr.mxu0 0.0
    %303 = vmatpush1.msra.mxu0 0.0
    %304 = vmatprep.subr.mxu0 0.0
    %305 = vmatpush1.msra.mxu0 0.0
    %306 = vmatprep.subr.mxu0 0.0
    %307 = vmatpush1.msra.mxu0 0.0
    %308 = vmatprep.subr.mxu0 0.0
    %309 = vmatpush1.msra.mxu0 0.0
    %310 = vmatprep.subr.mxu0 0.0
    %311 = vmatpush1.msra.mxu0 0.0
    %312 = vmatprep.subr.mxu0 0.0
    %313 = vmatpush1.msra.mxu0 0.0
    %314 = vmatprep.subr.mxu0 0.0
    %315 = vmatpush1.msra.mxu0 0.0
    %316 = vmatprep.subr.mxu0 0.0
    %317 = vmatpush1.msra.mxu0 0.0
    %318 = vmatprep.subr.mxu0 0.0
    %319 = vmatpush1.msra.mxu0 0.0
    %320 = vmatprep.subr.mxu0 0.0
    %321 = vmatpush1.msra.mxu0 0.0
    %322 = vmatprep.subr.mxu0 0.0
    %323 = vmatpush1.msra.mxu0 0.0
    %324 = vmatprep.subr.mxu0 %v61
    %325 = vmatpush1.msra.mxu0 %v60
    %326 = vmatprep.subr.mxu0 %v56
    %327 = vmatpush1.msra.mxu0 %v55
    %328 = vmatprep.subr.mxu0 %v51
    %329 = vmatpush1.msra.mxu0 %v50
    %330 = vmatprep.subr.mxu0 %v46
    %331 = vmatpush1.msra.mxu0 %v45
    %332 = vmatprep.subr.mxu0 0.0
    %333 = vmatpush2.msra.mxu0 0.0
    %334 = vmatprep.subr.mxu0 0.0
    %335 = vmatpush2.msra.mxu0 0.0
    %336 = vmatprep.subr.mxu0 0.0
    %337 = vmatpush2.msra.mxu0 0.0
    %338 = vmatprep.subr.mxu0 0.0
    %339 = vmatpush2.msra.mxu0 0.0
    %340 = vmatprep.subr.mxu0 0.0
    %341 = vmatpush2.msra.mxu0 0.0
    %342 = vmatprep.subr.mxu0 0.0
    %343 = vmatpush2.msra.mxu0 0.0
    %344 = vmatprep.subr.mxu0 0.0
    %345 = vmatpush2.msra.mxu0 0.0
    %346 = vmatprep.subr.mxu0 0.0
    %347 = vmatpush2.msra.mxu0 0.0
    %348 = vmatprep.subr.mxu0 0.0
    %349 = vmatpush2.msra.mxu0 0.0
    %350 = vmatprep.subr.mxu0 0.0
    %351 = vmatpush2.msra.mxu0 0.0
    %352 = vmatprep.subr.mxu0 0.0
    %353 = vmatpush2.msra.mxu0 0.0
    %354 = vmatprep.subr.mxu0 0.0
    %355 = vmatpush2.msra.mxu0 0.0
    %356 = vmatprep.subr.mxu0 0.0
    %357 = vmatpush2.msra.mxu0 0.0
    %358 = vmatprep.subr.mxu0 0.0
    %359 = vmatpush2.msra.mxu0 0.0
    %360 = vmatprep.subr.mxu0 0.0
    %361 = vmatpush2.msra.mxu0 0.0
    %362 = vmatprep.subr.mxu0 0.0
    %363 = vmatpush2.msra.mxu0 0.0
    %364 = vmatprep.mubr.f32.mxu0 0.0
    %365 = vmatmul.mubr.f32.gmra.mxu0 %v92
    %v366 = vpop.f32.mrf.mxu0
    %v367 = vadd.f32 %v76, %v366
    %v368 = vpop.f32.mrf.mxu0
    %v369 = vadd.f32 %v80, %v368
    %370 = vmatprep.mubr.f32.mxu0 0.0
    %371 = vmatmul.mubr.f32.gmra.mxu0 %v95
    %v372 = vpop.f32.mrf.mxu0
    %v373 = vadd.f32 %v76, %v372
    %v374 = vpop.f32.mrf.mxu0
    %v375 = vadd.f32 %v80, %v374
    %376 = vmatprep.mubr.f32.mxu0 0.0
    %377 = vmatmul.mubr.f32.gmra.mxu0 %v98
    %v378 = vpop.f32.mrf.mxu0
    %v379 = vadd.f32 %v76, %v378
    %v380 = vpop.f32.mrf.mxu0
    %v381 = vadd.f32 %v80, %v380
    %382 = vmatprep.mubr.f32.mxu0 0.0
    %383 = vmatmul.mubr.f32.gmra.mxu0 %v101
    %v384 = vpop.f32.mrf.mxu0
    %v385 = vadd.f32 %v76, %v384
    %v386 = vpop.f32.mrf.mxu0
    %v387 = vadd.f32 %v80, %v386
    %388 = vmatprep.mubr.f32.mxu0 0.0
    %389 = vmatmul.mubr.f32.gmra.mxu0 %v104
    %v390 = vpop.f32.mrf.mxu0
    %v391 = vadd.f32 %v76, %v390
    %v392 = vpop.f32.mrf.mxu0
    %v393 = vadd.f32 %v80, %v392
    %394 = vmatprep.mubr.f32.mxu0 0.0
    %395 = vmatmul.mubr.f32.gmra.mxu0 %v107
    %v396 = vpop.f32.mrf.mxu0
    %v397 = vadd.f32 %v76, %v396
    %v398 = vpop.f32.mrf.mxu0
    %v399 = vadd.f32 %v80, %v398
    %400 = vmatprep.mubr.f32.mxu0 0.0
    %401 = vmatmul.mubr.f32.gmra.mxu0 %v110
    %v402 = vpop.f32.mrf.mxu0
    %v403 = vadd.f32 %v76, %v402
    %v404 = vpop.f32.mrf.mxu0
    %v405 = vadd.f32 %v80, %v404
    %406 = vmatprep.mubr.f32.mxu0 0.0
    %407 = vmatmul.mubr.f32.gmra.mxu0 %v113
    %v408 = vpop.f32.mrf.mxu0
    %v409 = vadd.f32 %v76, %v408
    %v410 = vpop.f32.mrf.mxu0
    %v411 = vadd.f32 %v80, %v410
    %412 = vmatprep.mubr.f32.mxu0 0.0
    %413 = vmatmul.mubr.f32.gmra.mxu0 %v116
    %v414 = vpop.f32.mrf.mxu0
    %v415 = vadd.f32 %v76, %v414
    %v416 = vpop.f32.mrf.mxu0
    %v417 = vadd.f32 %v80, %v416
    %418 = vmatprep.mubr.f32.mxu0 0.0
    %419 = vmatmul.mubr.f32.gmra.mxu0 %v119
    %v420 = vpop.f32.mrf.mxu0
    %v421 = vadd.f32 %v76, %v420
    %v422 = vpop.f32.mrf.mxu0
    %v423 = vadd.f32 %v80, %v422
    %424 = vmatprep.mubr.f32.mxu0 0.0
    %425 = vmatmul.mubr.f32.gmra.mxu0 %v122
    %v426 = vpop.f32.mrf.mxu0
    %v427 = vadd.f32 %v76, %v426
    %v428 = vpop.f32.mrf.mxu0
    %v429 = vadd.f32 %v80, %v428
    %430 = vmatprep.mubr.f32.mxu0 0.0
    %431 = vmatmul.mubr.f32.gmra.mxu0 %v125
    %v432 = vpop.f32.mrf.mxu0
    %v433 = vadd.f32 %v76, %v432
    %v434 = vpop.f32.mrf.mxu0
    %v435 = vadd.f32 %v80, %v434
    %436 = vmatprep.mubr.f32.mxu0 0.0
    %437 = vmatmul.mubr.f32.gmra.mxu0 %v128
    %v438 = vpop.f32.mrf.mxu0
    %v439 = vadd.f32 %v76, %v438
    %v440 = vpop.f32.mrf.mxu0
    %v441 = vadd.f32 %v80, %v440
    %442 = vmatprep.mubr.f32.mxu0 0.0
    %443 = vmatmul.mubr.f32.gmra.mxu0 %v131
    %v444 = vpop.f32.mrf.mxu0
    %v445 = vadd.f32 %v76, %v444
    %v446 = vpop.f32.mrf.mxu0
    %v447 = vadd.f32 %v80, %v446
    %448 = vmatprep.mubr.f32.mxu0 0.0
    %449 = vmatmul.mubr.f32.gmra.mxu0 %v134
    %v450 = vpop.f32.mrf.mxu0
    %v451 = vadd.f32 %v76, %v450
    %v452 = vpop.f32.mrf.mxu0
    %v453 = vadd.f32 %v80, %v452
    %454 = vmatprep.mubr.f32.mxu0 0.0
    %455 = vmatmul.mubr.f32.gmra.mxu0 %v137
    %v456 = vpop.f32.mrf.mxu0
    %v457 = vadd.f32 %v76, %v456
    %v458 = vpop.f32.mrf.mxu0
    %v459 = vadd.f32 %v80, %v458
    %460 = vdwg.mxu0
    %461 = vmatprep.subr.mxu0 0.0
    %462 = vmatpush1.msra.mxu0 0.0
    %463 = vmatprep.subr.mxu0 0.0
    %464 = vmatpush1.msra.mxu0 0.0
    %465 = vmatprep.subr.mxu0 0.0
    %466 = vmatpush1.msra.mxu0 0.0
    %467 = vmatprep.subr.mxu0 0.0
    %468 = vmatpush1.msra.mxu0 0.0
    %469 = vmatprep.subr.mxu0 0.0
    %470 = vmatpush1.msra.mxu0 0.0
    %471 = vmatprep.subr.mxu0 0.0
    %472 = vmatpush1.msra.mxu0 0.0
    %473 = vmatprep.subr.mxu0 0.0
    %474 = vmatpush1.msra.mxu0 0.0
    %475 = vmatprep.subr.mxu0 0.0
    %476 = vmatpush1.msra.mxu0 0.0
    %477 = vmatprep.subr.mxu0 0.0
    %478 = vmatpush1.msra.mxu0 0.0
    %479 = vmatprep.subr.mxu0 0.0
    %480 = vmatpush1.msra.mxu0 0.0
    %481 = vmatprep.subr.mxu0 0.0
    %482 = vmatpush1.msra.mxu0 0.0
    %483 = vmatprep.subr.mxu0 0.0
    %484 = vmatpush1.msra.mxu0 0.0
    %485 = vmatprep.subr.mxu0 0.0
    %486 = vmatpush1.msra.mxu0 %v62
    %487 = vmatprep.subr.mxu0 0.0
    %488 = vmatpush1.msra.mxu0 %v57
    %489 = vmatprep.subr.mxu0 0.0
    %490 = vmatpush1.msra.mxu0 %v52
    %491 = vmatprep.subr.mxu0 0.0
    %492 = vmatpush1.msra.mxu0 %v47
    %493 = vmatprep.subr.mxu0 0.0
    %494 = vmatpush2.msra.mxu0 0.0
    %495 = vmatprep.subr.mxu0 0.0
    %496 = vmatpush2.msra.mxu0 0.0
    %497 = vmatprep.subr.mxu0 0.0
    %498 = vmatpush2.msra.mxu0 0.0
    %499 = vmatprep.subr.mxu0 0.0
    %500 = vmatpush2.msra.mxu0 0.0
    %501 = vmatprep.subr.mxu0 0.0
    %502 = vmatpush2.msra.mxu0 0.0
    %503 = vmatprep.subr.mxu0 0.0
    %504 = vmatpush2.msra.mxu0 0.0
    %505 = vmatprep.subr.mxu0 0.0
    %506 = vmatpush2.msra.mxu0 0.0
    %507 = vmatprep.subr.mxu0 0.0
    %508 = vmatpush2.msra.mxu0 0.0
    %509 = vmatprep.subr.mxu0 0.0
    %510 = vmatpush2.msra.mxu0 0.0
    %511 = vmatprep.subr.mxu0 0.0
    %512 = vmatpush2.msra.mxu0 0.0
    %513 = vmatprep.subr.mxu0 0.0
    %514 = vmatpush2.msra.mxu0 0.0
    %515 = vmatprep.subr.mxu0 0.0
    %516 = vmatpush2.msra.mxu0 0.0
    %517 = vmatprep.subr.mxu0 0.0
    %518 = vmatpush2.msra.mxu0 0.0
    %519 = vmatprep.subr.mxu0 0.0
    %520 = vmatpush2.msra.mxu0 0.0
    %521 = vmatprep.subr.mxu0 0.0
    %522 = vmatpush2.msra.mxu0 0.0
    %523 = vmatprep.subr.mxu0 0.0
    %524 = vmatpush2.msra.mxu0 0.0
    %525 = vmatprep.mubr.f32.mxu0 0.0
    %526 = vmatmul.mubr.f32.gmra.mxu0 %v92
    %v527 = vpop.f32.mrf.mxu0
    %v528 = vadd.f32 %v84, %v527
    %v529 = vpop.f32.mrf.mxu0
    %530 = vmatprep.mubr.f32.mxu0 0.0
    %531 = vmatmul.mubr.f32.gmra.mxu0 %v95
    %v532 = vpop.f32.mrf.mxu0
    %v533 = vadd.f32 %v84, %v532
    %v534 = vpop.f32.mrf.mxu0
    %535 = vmatprep.mubr.f32.mxu0 0.0
    %536 = vmatmul.mubr.f32.gmra.mxu0 %v98
    %v537 = vpop.f32.mrf.mxu0
    %v538 = vadd.f32 %v84, %v537
    %v539 = vpop.f32.mrf.mxu0
    %540 = vmatprep.mubr.f32.mxu0 0.0
    %541 = vmatmul.mubr.f32.gmra.mxu0 %v101
    %v542 = vpop.f32.mrf.mxu0
    %v543 = vadd.f32 %v84, %v542
    %v544 = vpop.f32.mrf.mxu0
    %545 = vmatprep.mubr.f32.mxu0 0.0
    %546 = vmatmul.mubr.f32.gmra.mxu0 %v104
    %v547 = vpop.f32.mrf.mxu0
    %v548 = vadd.f32 %v84, %v547
    %v549 = vpop.f32.mrf.mxu0
    %550 = vmatprep.mubr.f32.mxu0 0.0
    %551 = vmatmul.mubr.f32.gmra.mxu0 %v107
    %v552 = vpop.f32.mrf.mxu0
    %v553 = vadd.f32 %v84, %v552
    %v554 = vpop.f32.mrf.mxu0
    %555 = vmatprep.mubr.f32.mxu0 0.0
    %556 = vmatmul.mubr.f32.gmra.mxu0 %v110
    %v557 = vpop.f32.mrf.mxu0
    %v558 = vadd.f32 %v84, %v557
    %v559 = vpop.f32.mrf.mxu0
    %560 = vmatprep.mubr.f32.mxu0 0.0
    %561 = vmatmul.mubr.f32.gmra.mxu0 %v113
    %v562 = vpop.f32.mrf.mxu0
    %v563 = vadd.f32 %v84, %v562
    %v564 = vpop.f32.mrf.mxu0
    %565 = vmatprep.mubr.f32.mxu0 0.0
    %566 = vmatmul.mubr.f32.gmra.mxu0 %v116
    %v567 = vpop.f32.mrf.mxu0
    %v568 = vadd.f32 %v84, %v567
    %v569 = vpop.f32.mrf.mxu0
    %570 = vmatprep.mubr.f32.mxu0 0.0
    %571 = vmatmul.mubr.f32.gmra.mxu0 %v119
    %v572 = vpop.f32.mrf.mxu0
    %v573 = vadd.f32 %v84, %v572
    %v574 = vpop.f32.mrf.mxu0
    %575 = vmatprep.mubr.f32.mxu0 0.0
    %576 = vmatmul.mubr.f32.gmra.mxu0 %v122
    %v577 = vpop.f32.mrf.mxu0
    %v578 = vadd.f32 %v84, %v577
    %v579 = vpop.f32.mrf.mxu0
    %580 = vmatprep.mubr.f32.mxu0 0.0
    %581 = vmatmul.mubr.f32.gmra.mxu0 %v125
    %v582 = vpop.f32.mrf.mxu0
    %v583 = vadd.f32 %v84, %v582
    %v584 = vpop.f32.mrf.mxu0
    %585 = vmatprep.mubr.f32.mxu0 0.0
    %586 = vmatmul.mubr.f32.gmra.mxu0 %v128
    %v587 = vpop.f32.mrf.mxu0
    %v588 = vadd.f32 %v84, %v587
    %v589 = vpop.f32.mrf.mxu0
    %590 = vmatprep.mubr.f32.mxu0 0.0
    %591 = vmatmul.mubr.f32.gmra.mxu0 %v131
    %v592 = vpop.f32.mrf.mxu0
    %v593 = vadd.f32 %v84, %v592
    %v594 = vpop.f32.mrf.mxu0
    %595 = vmatprep.mubr.f32.mxu0 0.0
    %596 = vmatmul.mubr.f32.gmra.mxu0 %v134
    %v597 = vpop.f32.mrf.mxu0
    %v598 = vadd.f32 %v84, %v597
    %v599 = vpop.f32.mrf.mxu0
    %600 = vmatprep.mubr.f32.mxu0 0.0
    %601 = vmatmul.mubr.f32.gmra.mxu0 %v137
    %v602 = vpop.f32.mrf.mxu0
    %v603 = vadd.f32 %v84, %v602
    %v604 = vpop.f32.mrf.mxu0
    %605 = vdwg.mxu0
    %v606 = vmul.f32 %v206, 0.5
    %v607 = vmul.f32 %v208, 0.5
    %v608 = vmul.f32 %v367, 0.5
    %v609 = vmul.f32 %v369, 0.5
    %v610 = vmul.f32 %v528, 0.5
    %v611 = vmul.f32 %v212, 0.5
    %v612 = vmul.f32 %v214, 0.5
    %v613 = vmul.f32 %v373, 0.5
    %v614 = vmul.f32 %v375, 0.5
    %v615 = vmul.f32 %v533, 0.5
    %v616 = vmul.f32 %v218, 0.5
    %v617 = vmul.f32 %v220, 0.5
    %v618 = vmul.f32 %v379, 0.5
    %v619 = vmul.f32 %v381, 0.5
    %v620 = vmul.f32 %v538, 0.5
    %v621 = vmul.f32 %v224, 0.5
    %v622 = vmul.f32 %v226, 0.5
    %v623 = vmul.f32 %v385, 0.5
    %v624 = vmul.f32 %v387, 0.5
    %v625 = vmul.f32 %v543, 0.5
    %v626 = vmul.f32 %v230, 0.5
    %v627 = vmul.f32 %v232, 0.5
    %v628 = vmul.f32 %v391, 0.5
    %v629 = vmul.f32 %v393, 0.5
    %v630 = vmul.f32 %v548, 0.5
    %v631 = vmul.f32 %v236, 0.5
    %v632 = vmul.f32 %v238, 0.5
    %v633 = vmul.f32 %v397, 0.5
    %v634 = vmul.f32 %v399, 0.5
    %v635 = vmul.f32 %v553, 0.5
    %v636 = vmul.f32 %v242, 0.5
    %v637 = vmul.f32 %v244, 0.5
    %v638 = vmul.f32 %v403, 0.5
    %v639 = vmul.f32 %v405, 0.5
    %v640 = vmul.f32 %v558, 0.5
    %v641 = vmul.f32 %v248, 0.5
    %v642 = vmul.f32 %v250, 0.5
    %v643 = vmul.f32 %v409, 0.5
    %v644 = vmul.f32 %v411, 0.5
    %v645 = vmul.f32 %v563, 0.5
    %v646 = vmul.f32 %v254, 0.5
    %v647 = vmul.f32 %v256, 0.5
    %v648 = vmul.f32 %v415, 0.5
    %v649 = vmul.f32 %v417, 0.5
    %v650 = vmul.f32 %v568, 0.5
    %v651 = vmul.f32 %v260, 0.5
    %v652 = vmul.f32 %v262, 0.5
    %v653 = vmul.f32 %v421, 0.5
    %v654 = vmul.f32 %v423, 0.5
    %v655 = vmul.f32 %v573, 0.5
    %v656 = vmul.f32 %v266, 0.5
    %v657 = vmul.f32 %v268, 0.5
    %v658 = vmul.f32 %v427, 0.5
    %v659 = vmul.f32 %v429, 0.5
    %v660 = vmul.f32 %v578, 0.5
    %v661 = vmul.f32 %v272, 0.5
    %v662 = vmul.f32 %v274, 0.5
    %v663 = vmul.f32 %v433, 0.5
    %v664 = vmul.f32 %v435, 0.5
    %v665 = vmul.f32 %v583, 0.5
    %v666 = vmul.f32 %v278, 0.5
    %v667 = vmul.f32 %v280, 0.5
    %v668 = vmul.f32 %v439, 0.5
    %v669 = vmul.f32 %v441, 0.5
    %v670 = vmul.f32 %v588, 0.5
    %v671 = vmul.f32 %v284, 0.5
    %v672 = vmul.f32 %v286, 0.5
    %v673 = vmul.f32 %v445, 0.5
    %v674 = vmul.f32 %v447, 0.5
    %v675 = vmul.f32 %v593, 0.5
    %v676 = vmul.f32 %v290, 0.5
    %v677 = vmul.f32 %v292, 0.5
    %v678 = vmul.f32 %v451, 0.5
    %v679 = vmul.f32 %v453, 0.5
    %v680 = vmul.f32 %v598, 0.5
    %v681 = vmul.f32 %v296, 0.5
    %v682 = vmul.f32 %v298, 0.5
    %v683 = vmul.f32 %v457, 0.5
    %v684 = vmul.f32 %v459, 0.5
    %v685 = vmul.f32 %v603, 0.5
    %v686 = vtanh.pop %v606
    %v687 = vtanh.pop %v607
    %v688 = vtanh.pop %v608
    %v689 = vtanh.pop %v609
    %v690 = vtanh.pop %v610
    %v691 = vtanh.pop %v611
    %v692 = vtanh.pop %v612
    %v693 = vtanh.pop %v613
    %v694 = vtanh.pop %v614
    %v695 = vtanh.pop %v615
    %v696 = vtanh.pop %v616
    %v697 = vtanh.pop %v617
    %v698 = vtanh.pop %v618
    %v699 = vtanh.pop %v619
    %v700 = vtanh.pop %v620
    %v701 = vtanh.pop %v621
    %v702 = vtanh.pop %v622
    %v703 = vtanh.pop %v623
    %v704 = vtanh.pop %v624
    %v705 = vtanh.pop %v625
    %v706 = vtanh.pop %v626
    %v707 = vtanh.pop %v627
    %v708 = vtanh.pop %v628
    %v709 = vtanh.pop %v629
    %v710 = vtanh.pop %v630
    %v711 = vtanh.pop %v631
    %v712 = vtanh.pop %v632
    %v713 = vtanh.pop %v633
    %v714 = vtanh.pop %v634
    %v715 = vtanh.pop %v635
    %v716 = vtanh.pop %v636
    %v717 = vtanh.pop %v637
    %v718 = vtanh.pop %v638
    %v719 = vtanh.pop %v639
    %v720 = vtanh.pop %v640
    %v721 = vtanh.pop %v641
    %v722 = vtanh.pop %v642
    %v723 = vtanh.pop %v643
    %v724 = vtanh.pop %v644
    %v725 = vtanh.pop %v645
    %v726 = vtanh.pop %v646
    %v727 = vtanh.pop %v647
    %v728 = vtanh.pop %v648
    %v729 = vtanh.pop %v649
    %v730 = vtanh.pop %v650
    %v731 = vtanh.pop %v651
    %v732 = vtanh.pop %v652
    %v733 = vtanh.pop %v653
    %v734 = vtanh.pop %v654
    %v735 = vtanh.pop %v655
    %v736 = vtanh.pop %v656
    %v737 = vtanh.pop %v657
    %v738 = vtanh.pop %v658
    %v739 = vtanh.pop %v659
    %v740 = vtanh.pop %v660
    %v741 = vtanh.pop %v661
    %v742 = vtanh.pop %v662
    %v743 = vtanh.pop %v663
    %v744 = vtanh.pop %v664
    %v745 = vtanh.pop %v665
    %v746 = vtanh.pop %v666
    %v747 = vtanh.pop %v667
    %v748 = vtanh.pop %v668
    %v749 = vtanh.pop %v669
    %v750 = vtanh.pop %v670
    %v751 = vtanh.pop %v671
    %v752 = vtanh.pop %v672
    %v753 = vtanh.pop %v673
    %v754 = vtanh.pop %v674
    %v755 = vtanh.pop %v675
    %v756 = vtanh.pop %v676
    %v757 = vtanh.pop %v677
    %v758 = vtanh.pop %v678
    %v759 = vtanh.pop %v679
    %v760 = vtanh.pop %v680
    %v761 = vtanh.pop %v681
    %v762 = vtanh.pop %v682
    %v763 = vtanh.pop %v683
    %v764 = vtanh.pop %v684
    %v765 = vtanh.pop %v685
    %v766 = vmul.f32 %v686, 0.5
    %v767 = vmul.f32 %v687, 0.5
    %v768 = vmul.f32 %v688, 0.5
    %v769 = vmul.f32 %v689, 0.5
    %v770 = vmul.f32 %v690, 0.5
    %v771 = vmul.f32 %v691, 0.5
    %v772 = vmul.f32 %v692, 0.5
    %v773 = vmul.f32 %v693, 0.5
    %v774 = vmul.f32 %v694, 0.5
    %v775 = vmul.f32 %v695, 0.5
    %v776 = vmul.f32 %v696, 0.5
    %v777 = vmul.f32 %v697, 0.5
    %v778 = vmul.f32 %v698, 0.5
    %v779 = vmul.f32 %v699, 0.5
    %v780 = vmul.f32 %v700, 0.5
    %v781 = vmul.f32 %v701, 0.5
    %v782 = vmul.f32 %v702, 0.5
    %v783 = vmul.f32 %v703, 0.5
    %v784 = vmul.f32 %v704, 0.5
    %v785 = vmul.f32 %v705, 0.5
    %v786 = vmul.f32 %v706, 0.5
    %v787 = vmul.f32 %v707, 0.5
    %v788 = vmul.f32 %v708, 0.5
    %v789 = vmul.f32 %v709, 0.5
    %v790 = vmul.f32 %v710, 0.5
    %v791 = vmul.f32 %v711, 0.5
    %v792 = vmul.f32 %v712, 0.5
    %v793 = vmul.f32 %v713, 0.5
    %v794 = vmul.f32 %v714, 0.5
    %v795 = vmul.f32 %v715, 0.5
    %v796 = vmul.f32 %v716, 0.5
    %v797 = vmul.f32 %v717, 0.5
    %v798 = vmul.f32 %v718, 0.5
    %v799 = vmul.f32 %v719, 0.5
    %v800 = vmul.f32 %v720, 0.5
    %v801 = vmul.f32 %v721, 0.5
    %v802 = vmul.f32 %v722, 0.5
    %v803 = vmul.f32 %v723, 0.5
    %v804 = vmul.f32 %v724, 0.5
    %v805 = vmul.f32 %v725, 0.5
    %v806 = vmul.f32 %v726, 0.5
    %v807 = vmul.f32 %v727, 0.5
    %v808 = vmul.f32 %v728, 0.5
    %v809 = vmul.f32 %v729, 0.5
    %v810 = vmul.f32 %v730, 0.5
    %v811 = vmul.f32 %v731, 0.5
    %v812 = vmul.f32 %v732, 0.5
    %v813 = vmul.f32 %v733, 0.5
    %v814 = vmul.f32 %v734, 0.5
    %v815 = vmul.f32 %v735, 0.5
    %v816 = vmul.f32 %v736, 0.5
    %v817 = vmul.f32 %v737, 0.5
    %v818 = vmul.f32 %v738, 0.5
    %v819 = vmul.f32 %v739, 0.5
    %v820 = vmul.f32 %v740, 0.5
    %v821 = vmul.f32 %v741, 0.5
    %v822 = vmul.f32 %v742, 0.5
    %v823 = vmul.f32 %v743, 0.5
    %v824 = vmul.f32 %v744, 0.5
    %v825 = vmul.f32 %v745, 0.5
    %v826 = vmul.f32 %v746, 0.5
    %v827 = vmul.f32 %v747, 0.5
    %v828 = vmul.f32 %v748, 0.5
    %v829 = vmul.f32 %v749, 0.5
    %v830 = vmul.f32 %v750, 0.5
    %v831 = vmul.f32 %v751, 0.5
    %v832 = vmul.f32 %v752, 0.5
    %v833 = vmul.f32 %v753, 0.5
    %v834 = vmul.f32 %v754, 0.5
    %v835 = vmul.f32 %v755, 0.5
    %v836 = vmul.f32 %v756, 0.5
    %v837 = vmul.f32 %v757, 0.5
    %v838 = vmul.f32 %v758, 0.5
    %v839 = vmul.f32 %v759, 0.5
    %v840 = vmul.f32 %v760, 0.5
    %v841 = vmul.f32 %v761, 0.5
    %v842 = vmul.f32 %v762, 0.5
    %v843 = vmul.f32 %v763, 0.5
    %v844 = vmul.f32 %v764, 0.5
    %v845 = vmul.f32 %v765, 0.5
    %v846 = vadd.f32 %v766, 0.5
    %v847 = vadd.f32 %v767, 0.5
    %v848 = vadd.f32 %v768, 0.5
    %v849 = vadd.f32 %v769, 0.5
    %v850 = vadd.f32 %v770, 0.5
    %v851 = vadd.f32 %v771, 0.5
    %v852 = vadd.f32 %v772, 0.5
    %v853 = vadd.f32 %v773, 0.5
    %v854 = vadd.f32 %v774, 0.5
    %v855 = vadd.f32 %v775, 0.5
    %v856 = vadd.f32 %v776, 0.5
    %v857 = vadd.f32 %v777, 0.5
    %v858 = vadd.f32 %v778, 0.5
    %v859 = vadd.f32 %v779, 0.5
    %v860 = vadd.f32 %v780, 0.5
    %v861 = vadd.f32 %v781, 0.5
    %v862 = vadd.f32 %v782, 0.5
    %v863 = vadd.f32 %v783, 0.5
    %v864 = vadd.f32 %v784, 0.5
    %v865 = vadd.f32 %v785, 0.5
    %v866 = vadd.f32 %v786, 0.5
    %v867 = vadd.f32 %v787, 0.5
    %v868 = vadd.f32 %v788, 0.5
    %v869 = vadd.f32 %v789, 0.5
    %v870 = vadd.f32 %v790, 0.5
    %v871 = vadd.f32 %v791, 0.5
    %v872 = vadd.f32 %v792, 0.5
    %v873 = vadd.f32 %v793, 0.5
    %v874 = vadd.f32 %v794, 0.5
    %v875 = vadd.f32 %v795, 0.5
    %v876 = vadd.f32 %v796, 0.5
    %v877 = vadd.f32 %v797, 0.5
    %v878 = vadd.f32 %v798, 0.5
    %v879 = vadd.f32 %v799, 0.5
    %v880 = vadd.f32 %v800, 0.5
    %v881 = vadd.f32 %v801, 0.5
    %v882 = vadd.f32 %v802, 0.5
    %v883 = vadd.f32 %v803, 0.5
    %v884 = vadd.f32 %v804, 0.5
    %v885 = vadd.f32 %v805, 0.5
    %v886 = vadd.f32 %v806, 0.5
    %v887 = vadd.f32 %v807, 0.5
    %v888 = vadd.f32 %v808, 0.5
    %v889 = vadd.f32 %v809, 0.5
    %v890 = vadd.f32 %v810, 0.5
    %v891 = vadd.f32 %v811, 0.5
    %v892 = vadd.f32 %v812, 0.5
    %v893 = vadd.f32 %v813, 0.5
    %v894 = vadd.f32 %v814, 0.5
    %v895 = vadd.f32 %v815, 0.5
    %v896 = vadd.f32 %v816, 0.5
    %v897 = vadd.f32 %v817, 0.5
    %v898 = vadd.f32 %v818, 0.5
    %v899 = vadd.f32 %v819, 0.5
    %v900 = vadd.f32 %v820, 0.5
    %v901 = vadd.f32 %v821, 0.5
    %v902 = vadd.f32 %v822, 0.5
    %v903 = vadd.f32 %v823, 0.5
    %v904 = vadd.f32 %v824, 0.5
    %v905 = vadd.f32 %v825, 0.5
    %v906 = vadd.f32 %v826, 0.5
    %v907 = vadd.f32 %v827, 0.5
    %v908 = vadd.f32 %v828, 0.5
    %v909 = vadd.f32 %v829, 0.5
    %v910 = vadd.f32 %v830, 0.5
    %v911 = vadd.f32 %v831, 0.5
    %v912 = vadd.f32 %v832, 0.5
    %v913 = vadd.f32 %v833, 0.5
    %v914 = vadd.f32 %v834, 0.5
    %v915 = vadd.f32 %v835, 0.5
    %v916 = vadd.f32 %v836, 0.5
    %v917 = vadd.f32 %v837, 0.5
    %v918 = vadd.f32 %v838, 0.5
    %v919 = vadd.f32 %v839, 0.5
    %v920 = vadd.f32 %v840, 0.5
    %v921 = vadd.f32 %v841, 0.5
    %v922 = vadd.f32 %v842, 0.5
    %v923 = vadd.f32 %v843, 0.5
    %v924 = vadd.f32 %v844, 0.5
    %v925 = vadd.f32 %v845, 0.5
    %v926 = vadd.f32 %v846, %v847
    %v927 = vadd.f32 %v851, %v852
    %v928 = vadd.f32 %v856, %v857
    %v929 = vadd.f32 %v861, %v862
    %v930 = vadd.f32 %v926, %v848
    %v931 = vadd.f32 %v927, %v853
    %v932 = vadd.f32 %v928, %v858
    %v933 = vadd.f32 %v929, %v863
    %v934 = vmul.f32 %v930, 0.33333334
    %v935 = vmul.f32 %v931, 0.33333334
    %v936 = vmul.f32 %v932, 0.33333334
    %v937 = vmul.f32 %v933, 0.33333334
    %938 = vst [vmem:[#allocation5] sm:$0xff] %v934
    %939 = vst [vmem:[#allocation5 + $0x18] sm:$0xff] %v935
    %940 = vst [vmem:[#allocation5 + $0x30] sm:$0xff] %v936
    %941 = vst [vmem:[#allocation5 + $0x48] sm:$0xff] %v937
    %v942 = vmin.f32 %v846, %v847
    %v943 = vmin.f32 %v851, %v852
    %v944 = vmin.f32 %v856, %v857
    %v945 = vmin.f32 %v861, %v862
    %v946 = vmax.f32 %v846, %v847
    %v947 = vmax.f32 %v851, %v852
    %v948 = vmax.f32 %v856, %v857
    %v949 = vmax.f32 %v861, %v862
    %v950 = vmin.f32 %v848, %v849
    %v951 = vmin.f32 %v853, %v854
    %v952 = vmin.f32 %v858, %v859
    %v953 = vmin.f32 %v863, %v864
    %v954 = vmax.f32 %v848, %v849
    %v955 = vmax.f32 %v853, %v854
    %v956 = vmax.f32 %v858, %v859
    %v957 = vmax.f32 %v863, %v864
    %v958 = vmin.f32 %v946, %v950
    %v959 = vmin.f32 %v947, %v951
    %v960 = vmin.f32 %v948, %v952
    %v961 = vmin.f32 %v949, %v953
    %v962 = vmax.f32 %v946, %v950
    %v963 = vmax.f32 %v947, %v951
    %v964 = vmax.f32 %v948, %v952
    %v965 = vmax.f32 %v949, %v953
    %v966 = vmin.f32 %v954, %v850
    %v967 = vmin.f32 %v955, %v855
    %v968 = vmin.f32 %v956, %v860
    %v969 = vmin.f32 %v957, %v865
    %v970 = vmax.f32 %v954, %v850
    %v971 = vmax.f32 %v955, %v855
    %v972 = vmax.f32 %v956, %v860
    %v973 = vmax.f32 %v957, %v865
    %v974 = vmin.f32 %v942, %v958
    %v975 = vmin.f32 %v943, %v959
    %v976 = vmin.f32 %v944, %v960
    %v977 = vmin.f32 %v945, %v961
    %v978 = vmax.f32 %v942, %v958
    %v979 = vmax.f32 %v943, %v959
    %v980 = vmax.f32 %v944, %v960
    %v981 = vmax.f32 %v945, %v961
    %v982 = vmin.f32 %v962, %v966
    %v983 = vmin.f32 %v963, %v967
    %v984 = vmin.f32 %v964, %v968
    %v985 = vmin.f32 %v965, %v969
    %v986 = vmax.f32 %v962, %v966
    %v987 = vmax.f32 %v963, %v967
    %v988 = vmax.f32 %v964, %v968
    %v989 = vmax.f32 %v965, %v969
    %v990 = vmin.f32 %v978, %v982
    %v991 = vmin.f32 %v979, %v983
    %v992 = vmin.f32 %v980, %v984
    %v993 = vmin.f32 %v981, %v985
    %v994 = vmax.f32 %v978, %v982
    %v995 = vmax.f32 %v979, %v983
    %v996 = vmax.f32 %v980, %v984
    %v997 = vmax.f32 %v981, %v985
    %v998 = vmin.f32 %v986, %v970
    %v999 = vmin.f32 %v987, %v971
    %v1000 = vmin.f32 %v988, %v972
    %v1001 = vmin.f32 %v989, %v973
    %v1002 = vmax.f32 %v986, %v970
    %v1003 = vmax.f32 %v987, %v971
    %v1004 = vmax.f32 %v988, %v972
    %v1005 = vmax.f32 %v989, %v973
    %v1006 = vmin.f32 %v974, %v990
    %v1007 = vmin.f32 %v975, %v991
    %v1008 = vmin.f32 %v976, %v992
    %v1009 = vmin.f32 %v977, %v993
    %v1010 = vmax.f32 %v974, %v990
    %v1011 = vmax.f32 %v975, %v991
    %v1012 = vmax.f32 %v976, %v992
    %v1013 = vmax.f32 %v977, %v993
    %v1014 = vmax.f32 %v994, %v998
    %v1015 = vmax.f32 %v995, %v999
    %v1016 = vmax.f32 %v996, %v1000
    %v1017 = vmax.f32 %v997, %v1001
    %v1018 = vsub.f32 %v1010, %v1006
    %v1019 = vsub.f32 %v1011, %v1007
    %v1020 = vsub.f32 %v1012, %v1008
    %v1021 = vsub.f32 %v1013, %v1009
    %v1022 = vmul.f32 %v1018, 0.4
    %v1023 = vmul.f32 %v1019, 0.4
    %v1024 = vmul.f32 %v1020, 0.4
    %v1025 = vmul.f32 %v1021, 0.4
    %v1026 = vadd.f32 %v1006, %v1022
    %v1027 = vadd.f32 %v1007, %v1023
    %v1028 = vadd.f32 %v1008, %v1024
    %v1029 = vadd.f32 %v1009, %v1025
    %1030 = vst [vmem:[#allocation5 + $0x8] sm:$0xff] %v1026
    %1031 = vst [vmem:[#allocation5 + $0x20] sm:$0xff] %v1027
    %1032 = vst [vmem:[#allocation5 + $0x38] sm:$0xff] %v1028
    %1033 = vst [vmem:[#allocation5 + $0x50] sm:$0xff] %v1029
    %v1034 = vsub.f32 %v1002, %v1014
    %v1035 = vsub.f32 %v1003, %v1015
    %v1036 = vsub.f32 %v1004, %v1016
    %v1037 = vsub.f32 %v1005, %v1017
    %v1038 = vmul.f32 %v1034, 0.6
    %v1039 = vmul.f32 %v1035, 0.6
    %v1040 = vmul.f32 %v1036, 0.6
    %v1041 = vmul.f32 %v1037, 0.6
    %v1042 = vadd.f32 %v1014, %v1038
    %v1043 = vadd.f32 %v1015, %v1039
    %v1044 = vadd.f32 %v1016, %v1040
    %v1045 = vadd.f32 %v1017, %v1041
    %1046 = vst [vmem:[#allocation5 + $0x10] sm:$0xff] %v1042
    %1047 = vst [vmem:[#allocation5 + $0x28] sm:$0xff] %v1043
    %1048 = vst [vmem:[#allocation5 + $0x40] sm:$0xff] %v1044
    %1049 = vst [vmem:[#allocation5 + $0x58] sm:$0xff] %v1045
    %v1050 = vadd.f32 %v866, %v867
    %v1051 = vadd.f32 %v871, %v872
    %v1052 = vadd.f32 %v876, %v877
    %v1053 = vadd.f32 %v881, %v882
    %v1054 = vadd.f32 %v1050, %v868
    %v1055 = vadd.f32 %v1051, %v873
    %v1056 = vadd.f32 %v1052, %v878
    %v1057 = vadd.f32 %v1053, %v883
    %v1058 = vmul.f32 %v1054, 0.33333334
    %v1059 = vmul.f32 %v1055, 0.33333334
    %v1060 = vmul.f32 %v1056, 0.33333334
    %v1061 = vmul.f32 %v1057, 0.33333334
    %1062 = vst [vmem:[#allocation5 + $0x60] sm:$0xff] %v1058
    %1063 = vst [vmem:[#allocation5 + $0x78] sm:$0xff] %v1059
    %1064 = vst [vmem:[#allocation5 + $0x90] sm:$0xff] %v1060
    %1065 = vst [vmem:[#allocation5 + $0xa8] sm:$0xff] %v1061
    %v1066 = vmin.f32 %v866, %v867
    %v1067 = vmin.f32 %v871, %v872
    %v1068 = vmin.f32 %v876, %v877
    %v1069 = vmin.f32 %v881, %v882
    %v1070 = vmax.f32 %v866, %v867
    %v1071 = vmax.f32 %v871, %v872
    %v1072 = vmax.f32 %v876, %v877
    %v1073 = vmax.f32 %v881, %v882
    %v1074 = vmin.f32 %v868, %v869
    %v1075 = vmin.f32 %v873, %v874
    %v1076 = vmin.f32 %v878, %v879
    %v1077 = vmin.f32 %v883, %v884
    %v1078 = vmax.f32 %v868, %v869
    %v1079 = vmax.f32 %v873, %v874
    %v1080 = vmax.f32 %v878, %v879
    %v1081 = vmax.f32 %v883, %v884
    %v1082 = vmin.f32 %v1070, %v1074
    %v1083 = vmin.f32 %v1071, %v1075
    %v1084 = vmin.f32 %v1072, %v1076
    %v1085 = vmin.f32 %v1073, %v1077
    %v1086 = vmax.f32 %v1070, %v1074
    %v1087 = vmax.f32 %v1071, %v1075
    %v1088 = vmax.f32 %v1072, %v1076
    %v1089 = vmax.f32 %v1073, %v1077
    %v1090 = vmin.f32 %v1078, %v870
    %v1091 = vmin.f32 %v1079, %v875
    %v1092 = vmin.f32 %v1080, %v880
    %v1093 = vmin.f32 %v1081, %v885
    %v1094 = vmax.f32 %v1078, %v870
    %v1095 = vmax.f32 %v1079, %v875
    %v1096 = vmax.f32 %v1080, %v880
    %v1097 = vmax.f32 %v1081, %v885
    %v1098 = vmin.f32 %v1066, %v1082
    %v1099 = vmin.f32 %v1067, %v1083
    %v1100 = vmin.f32 %v1068, %v1084
    %v1101 = vmin.f32 %v1069, %v1085
    %v1102 = vmax.f32 %v1066, %v1082
    %v1103 = vmax.f32 %v1067, %v1083
    %v1104 = vmax.f32 %v1068, %v1084
    %v1105 = vmax.f32 %v1069, %v1085
    %v1106 = vmin.f32 %v1086, %v1090
    %v1107 = vmin.f32 %v1087, %v1091
    %v1108 = vmin.f32 %v1088, %v1092
    %v1109 = vmin.f32 %v1089, %v1093
    %v1110 = vmax.f32 %v1086, %v1090
    %v1111 = vmax.f32 %v1087, %v1091
    %v1112 = vmax.f32 %v1088, %v1092
    %v1113 = vmax.f32 %v1089, %v1093
    %v1114 = vmin.f32 %v1102, %v1106
    %v1115 = vmin.f32 %v1103, %v1107
    %v1116 = vmin.f32 %v1104, %v1108
    %v1117 = vmin.f32 %v1105, %v1109
    %v1118 = vmax.f32 %v1102, %v1106
    %v1119 = vmax.f32 %v1103, %v1107
    %v1120 = vmax.f32 %v1104, %v1108
    %v1121 = vmax.f32 %v1105, %v1109
    %v1122 = vmin.f32 %v1110, %v1094
    %v1123 = vmin.f32 %v1111, %v1095
    %v1124 = vmin.f32 %v1112, %v1096
    %v1125 = vmin.f32 %v1113, %v1097
    %v1126 = vmax.f32 %v1110, %v1094
    %v1127 = vmax.f32 %v1111, %v1095
    %v1128 = vmax.f32 %v1112, %v1096
    %v1129 = vmax.f32 %v1113, %v1097
    %v1130 = vmin.f32 %v1098, %v1114
    %v1131 = vmin.f32 %v1099, %v1115
    %v1132 = vmin.f32 %v1100, %v1116
    %v1133 = vmin.f32 %v1101, %v1117
    %v1134 = vmax.f32 %v1098, %v1114
    %v1135 = vmax.f32 %v1099, %v1115
    %v1136 = vmax.f32 %v1100, %v1116
    %v1137 = vmax.f32 %v1101, %v1117
    %v1138 = vmax.f32 %v1118, %v1122
    %v1139 = vmax.f32 %v1119, %v1123
    %v1140 = vmax.f32 %v1120, %v1124
    %v1141 = vmax.f32 %v1121, %v1125
    %v1142 = vsub.f32 %v1134, %v1130
    %v1143 = vsub.f32 %v1135, %v1131
    %v1144 = vsub.f32 %v1136, %v1132
    %v1145 = vsub.f32 %v1137, %v1133
    %v1146 = vmul.f32 %v1142, 0.4
    %v1147 = vmul.f32 %v1143, 0.4
    %v1148 = vmul.f32 %v1144, 0.4
    %v1149 = vmul.f32 %v1145, 0.4
    %v1150 = vadd.f32 %v1130, %v1146
    %v1151 = vadd.f32 %v1131, %v1147
    %v1152 = vadd.f32 %v1132, %v1148
    %v1153 = vadd.f32 %v1133, %v1149
    %1154 = vst [vmem:[#allocation5 + $0x68] sm:$0xff] %v1150
    %1155 = vst [vmem:[#allocation5 + $0x80] sm:$0xff] %v1151
    %1156 = vst [vmem:[#allocation5 + $0x98] sm:$0xff] %v1152
    %1157 = vst [vmem:[#allocation5 + $0xb0] sm:$0xff] %v1153
    %v1158 = vsub.f32 %v1126, %v1138
    %v1159 = vsub.f32 %v1127, %v1139
    %v1160 = vsub.f32 %v1128, %v1140
    %v1161 = vsub.f32 %v1129, %v1141
    %v1162 = vmul.f32 %v1158, 0.6
    %v1163 = vmul.f32 %v1159, 0.6
    %v1164 = vmul.f32 %v1160, 0.6
    %v1165 = vmul.f32 %v1161, 0.6
    %v1166 = vadd.f32 %v1138, %v1162
    %v1167 = vadd.f32 %v1139, %v1163
    %v1168 = vadd.f32 %v1140, %v1164
    %v1169 = vadd.f32 %v1141, %v1165
    %1170 = vst [vmem:[#allocation5 + $0x70] sm:$0xff] %v1166
    %1171 = vst [vmem:[#allocation5 + $0x88] sm:$0xff] %v1167
    %1172 = vst [vmem:[#allocation5 + $0xa0] sm:$0xff] %v1168
    %1173 = vst [vmem:[#allocation5 + $0xb8] sm:$0xff] %v1169
    %v1174 = vadd.f32 %v886, %v887
    %v1175 = vadd.f32 %v891, %v892
    %v1176 = vadd.f32 %v896, %v897
    %v1177 = vadd.f32 %v901, %v902
    %v1178 = vadd.f32 %v1174, %v888
    %v1179 = vadd.f32 %v1175, %v893
    %v1180 = vadd.f32 %v1176, %v898
    %v1181 = vadd.f32 %v1177, %v903
    %v1182 = vmul.f32 %v1178, 0.33333334
    %v1183 = vmul.f32 %v1179, 0.33333334
    %v1184 = vmul.f32 %v1180, 0.33333334
    %v1185 = vmul.f32 %v1181, 0.33333334
    %1186 = vst [vmem:[#allocation5 + $0xc0] sm:$0xff] %v1182
    %1187 = vst [vmem:[#allocation5 + $0xd8] sm:$0xff] %v1183
    %1188 = vst [vmem:[#allocation5 + $0xf0] sm:$0xff] %v1184
    %1189 = vst [vmem:[#allocation5 + $0x108] sm:$0xff] %v1185
    %v1190 = vmin.f32 %v886, %v887
    %v1191 = vmin.f32 %v891, %v892
    %v1192 = vmin.f32 %v896, %v897
    %v1193 = vmin.f32 %v901, %v902
    %v1194 = vmax.f32 %v886, %v887
    %v1195 = vmax.f32 %v891, %v892
    %v1196 = vmax.f32 %v896, %v897
    %v1197 = vmax.f32 %v901, %v902
    %v1198 = vmin.f32 %v888, %v889
    %v1199 = vmin.f32 %v893, %v894
    %v1200 = vmin.f32 %v898, %v899
    %v1201 = vmin.f32 %v903, %v904
    %v1202 = vmax.f32 %v888, %v889
    %v1203 = vmax.f32 %v893, %v894
    %v1204 = vmax.f32 %v898, %v899
    %v1205 = vmax.f32 %v903, %v904
    %v1206 = vmin.f32 %v1194, %v1198
    %v1207 = vmin.f32 %v1195, %v1199
    %v1208 = vmin.f32 %v1196, %v1200
    %v1209 = vmin.f32 %v1197, %v1201
    %v1210 = vmax.f32 %v1194, %v1198
    %v1211 = vmax.f32 %v1195, %v1199
    %v1212 = vmax.f32 %v1196, %v1200
    %v1213 = vmax.f32 %v1197, %v1201
    %v1214 = vmin.f32 %v1202, %v890
    %v1215 = vmin.f32 %v1203, %v895
    %v1216 = vmin.f32 %v1204, %v900
    %v1217 = vmin.f32 %v1205, %v905
    %v1218 = vmax.f32 %v1202, %v890
    %v1219 = vmax.f32 %v1203, %v895
    %v1220 = vmax.f32 %v1204, %v900
    %v1221 = vmax.f32 %v1205, %v905
    %v1222 = vmin.f32 %v1190, %v1206
    %v1223 = vmin.f32 %v1191, %v1207
    %v1224 = vmin.f32 %v1192, %v1208
    %v1225 = vmin.f32 %v1193, %v1209
    %v1226 = vmax.f32 %v1190, %v1206
    %v1227 = vmax.f32 %v1191, %v1207
    %v1228 = vmax.f32 %v1192, %v1208
    %v1229 = vmax.f32 %v1193, %v1209
    %v1230 = vmin.f32 %v1210, %v1214
    %v1231 = vmin.f32 %v1211, %v1215
    %v1232 = vmin.f32 %v1212, %v1216
    %v1233 = vmin.f32 %v1213, %v1217
    %v1234 = vmax.f32 %v1210, %v1214
    %v1235 = vmax.f32 %v1211, %v1215
    %v1236 = vmax.f32 %v1212, %v1216
    %v1237 = vmax.f32 %v1213, %v1217
    %v1238 = vmin.f32 %v1226, %v1230
    %v1239 = vmin.f32 %v1227, %v1231
    %v1240 = vmin.f32 %v1228, %v1232
    %v1241 = vmin.f32 %v1229, %v1233
    %v1242 = vmax.f32 %v1226, %v1230
    %v1243 = vmax.f32 %v1227, %v1231
    %v1244 = vmax.f32 %v1228, %v1232
    %v1245 = vmax.f32 %v1229, %v1233
    %v1246 = vmin.f32 %v1234, %v1218
    %v1247 = vmin.f32 %v1235, %v1219
    %v1248 = vmin.f32 %v1236, %v1220
    %v1249 = vmin.f32 %v1237, %v1221
    %v1250 = vmax.f32 %v1234, %v1218
    %v1251 = vmax.f32 %v1235, %v1219
    %v1252 = vmax.f32 %v1236, %v1220
    %v1253 = vmax.f32 %v1237, %v1221
    %v1254 = vmin.f32 %v1222, %v1238
    %v1255 = vmin.f32 %v1223, %v1239
    %v1256 = vmin.f32 %v1224, %v1240
    %v1257 = vmin.f32 %v1225, %v1241
    %v1258 = vmax.f32 %v1222, %v1238
    %v1259 = vmax.f32 %v1223, %v1239
    %v1260 = vmax.f32 %v1224, %v1240
    %v1261 = vmax.f32 %v1225, %v1241
    %v1262 = vmax.f32 %v1242, %v1246
    %v1263 = vmax.f32 %v1243, %v1247
    %v1264 = vmax.f32 %v1244, %v1248
    %v1265 = vmax.f32 %v1245, %v1249
    %v1266 = vsub.f32 %v1258, %v1254
    %v1267 = vsub.f32 %v1259, %v1255
    %v1268 = vsub.f32 %v1260, %v1256
    %v1269 = vsub.f32 %v1261, %v1257
    %v1270 = vmul.f32 %v1266, 0.4
    %v1271 = vmul.f32 %v1267, 0.4
    %v1272 = vmul.f32 %v1268, 0.4
    %v1273 = vmul.f32 %v1269, 0.4
    %v1274 = vadd.f32 %v1254, %v1270
    %v1275 = vadd.f32 %v1255, %v1271
    %v1276 = vadd.f32 %v1256, %v1272
    %v1277 = vadd.f32 %v1257, %v1273
    %1278 = vst [vmem:[#allocation5 + $0xc8] sm:$0xff] %v1274
    %1279 = vst [vmem:[#allocation5 + $0xe0] sm:$0xff] %v1275
    %1280 = vst [vmem:[#allocation5 + $0xf8] sm:$0xff] %v1276
    %1281 = vst [vmem:[#allocation5 + $0x110] sm:$0xff] %v1277
    %v1282 = vsub.f32 %v1250, %v1262
    %v1283 = vsub.f32 %v1251, %v1263
    %v1284 = vsub.f32 %v1252, %v1264
    %v1285 = vsub.f32 %v1253, %v1265
    %v1286 = vmul.f32 %v1282, 0.6
    %v1287 = vmul.f32 %v1283, 0.6
    %v1288 = vmul.f32 %v1284, 0.6
    %v1289 = vmul.f32 %v1285, 0.6
    %v1290 = vadd.f32 %v1262, %v1286
    %v1291 = vadd.f32 %v1263, %v1287
    %v1292 = vadd.f32 %v1264, %v1288
    %v1293 = vadd.f32 %v1265, %v1289
    %1294 = vst [vmem:[#allocation5 + $0xd0] sm:$0xff] %v1290
    %1295 = vst [vmem:[#allocation5 + $0xe8] sm:$0xff] %v1291
    %1296 = vst [vmem:[#allocation5 + $0x100] sm:$0xff] %v1292
    %1297 = vst [vmem:[#allocation5 + $0x118] sm:$0xff] %v1293
    %v1298 = vadd.f32 %v906, %v907
    %v1299 = vadd.f32 %v911, %v912
    %v1300 = vadd.f32 %v916, %v917
    %v1301 = vadd.f32 %v921, %v922
    %v1302 = vadd.f32 %v1298, %v908
    %v1303 = vadd.f32 %v1299, %v913
    %v1304 = vadd.f32 %v1300, %v918
    %v1305 = vadd.f32 %v1301, %v923
    %v1306 = vmul.f32 %v1302, 0.33333334
    %v1307 = vmul.f32 %v1303, 0.33333334
    %v1308 = vmul.f32 %v1304, 0.33333334
    %v1309 = vmul.f32 %v1305, 0.33333334
    %1310 = vst [vmem:[#allocation5 + $0x120] sm:$0xff] %v1306
    %1311 = vst [vmem:[#allocation5 + $0x138] sm:$0xff] %v1307
    %1312 = vst [vmem:[#allocation5 + $0x150] sm:$0xff] %v1308
    %1313 = vst [vmem:[#allocation5 + $0x168] sm:$0xff] %v1309
    %v1314 = vmin.f32 %v906, %v907
    %v1315 = vmin.f32 %v911, %v912
    %v1316 = vmin.f32 %v916, %v917
    %v1317 = vmin.f32 %v921, %v922
    %v1318 = vmax.f32 %v906, %v907
    %v1319 = vmax.f32 %v911, %v912
    %v1320 = vmax.f32 %v916, %v917
    %v1321 = vmax.f32 %v921, %v922
    %v1322 = vmin.f32 %v908, %v909
    %v1323 = vmin.f32 %v913, %v914
    %v1324 = vmin.f32 %v918, %v919
    %v1325 = vmin.f32 %v923, %v924
    %v1326 = vmax.f32 %v908, %v909
    %v1327 = vmax.f32 %v913, %v914
    %v1328 = vmax.f32 %v918, %v919
    %v1329 = vmax.f32 %v923, %v924
    %v1330 = vmin.f32 %v1318, %v1322
    %v1331 = vmin.f32 %v1319, %v1323
    %v1332 = vmin.f32 %v1320, %v1324
    %v1333 = vmin.f32 %v1321, %v1325
    %v1334 = vmax.f32 %v1318, %v1322
    %v1335 = vmax.f32 %v1319, %v1323
    %v1336 = vmax.f32 %v1320, %v1324
    %v1337 = vmax.f32 %v1321, %v1325
    %v1338 = vmin.f32 %v1326, %v910
    %v1339 = vmin.f32 %v1327, %v915
    %v1340 = vmin.f32 %v1328, %v920
    %v1341 = vmin.f32 %v1329, %v925
    %v1342 = vmax.f32 %v1326, %v910
    %v1343 = vmax.f32 %v1327, %v915
    %v1344 = vmax.f32 %v1328, %v920
    %v1345 = vmax.f32 %v1329, %v925
    %v1346 = vmin.f32 %v1314, %v1330
    %v1347 = vmin.f32 %v1315, %v1331
    %v1348 = vmin.f32 %v1316, %v1332
    %v1349 = vmin.f32 %v1317, %v1333
    %v1350 = vmax.f32 %v1314, %v1330
    %v1351 = vmax.f32 %v1315, %v1331
    %v1352 = vmax.f32 %v1316, %v1332
    %v1353 = vmax.f32 %v1317, %v1333
    %v1354 = vmin.f32 %v1334, %v1338
    %v1355 = vmin.f32 %v1335, %v1339
    %v1356 = vmin.f32 %v1336, %v1340
    %v1357 = vmin.f32 %v1337, %v1341
    %v1358 = vmax.f32 %v1334, %v1338
    %v1359 = vmax.f32 %v1335, %v1339
    %v1360 = vmax.f32 %v1336, %v1340
    %v1361 = vmax.f32 %v1337, %v1341
    %v1362 = vmin.f32 %v1350, %v1354
    %v1363 = vmin.f32 %v1351, %v1355
    %v1364 = vmin.f32 %v1352, %v1356
    %v1365 = vmin.f32 %v1353, %v1357
    %v1366 = vmax.f32 %v1350, %v1354
    %v1367 = vmax.f32 %v1351, %v1355
    %v1368 = vmax.f32 %v1352, %v1356
    %v1369 = vmax.f32 %v1353, %v1357
    %v1370 = vmin.f32 %v1358, %v1342
    %v1371 = vmin.f32 %v1359, %v1343
    %v1372 = vmin.f32 %v1360, %v1344
    %v1373 = vmin.f32 %v1361, %v1345
    %v1374 = vmax.f32 %v1358, %v1342
    %v1375 = vmax.f32 %v1359, %v1343
    %v1376 = vmax.f32 %v1360, %v1344
    %v1377 = vmax.f32 %v1361, %v1345
    %v1378 = vmin.f32 %v1346, %v1362
    %v1379 = vmin.f32 %v1347, %v1363
    %v1380 = vmin.f32 %v1348, %v1364
    %v1381 = vmin.f32 %v1349, %v1365
    %v1382 = vmax.f32 %v1346, %v1362
    %v1383 = vmax.f32 %v1347, %v1363
    %v1384 = vmax.f32 %v1348, %v1364
    %v1385 = vmax.f32 %v1349, %v1365
    %v1386 = vmax.f32 %v1366, %v1370
    %v1387 = vmax.f32 %v1367, %v1371
    %v1388 = vmax.f32 %v1368, %v1372
    %v1389 = vmax.f32 %v1369, %v1373
    %v1390 = vsub.f32 %v1382, %v1378
    %v1391 = vsub.f32 %v1383, %v1379
    %v1392 = vsub.f32 %v1384, %v1380
    %v1393 = vsub.f32 %v1385, %v1381
    %v1394 = vmul.f32 %v1390, 0.4
    %v1395 = vmul.f32 %v1391, 0.4
    %v1396 = vmul.f32 %v1392, 0.4
    %v1397 = vmul.f32 %v1393, 0.4
    %v1398 = vadd.f32 %v1378, %v1394
    %v1399 = vadd.f32 %v1379, %v1395
    %v1400 = vadd.f32 %v1380, %v1396
    %v1401 = vadd.f32 %v1381, %v1397
    %1402 = vst [vmem:[#allocation5 + $0x128] sm:$0xff] %v1398
    %1403 = vst [vmem:[#allocation5 + $0x140] sm:$0xff] %v1399
    %1404 = vst [vmem:[#allocation5 + $0x158] sm:$0xff] %v1400
    %1405 = vst [vmem:[#allocation5 + $0x170] sm:$0xff] %v1401
    %v1406 = vsub.f32 %v1374, %v1386
    %v1407 = vsub.f32 %v1375, %v1387
    %v1408 = vsub.f32 %v1376, %v1388
    %v1409 = vsub.f32 %v1377, %v1389
    %v1410 = vmul.f32 %v1406, 0.6
    %v1411 = vmul.f32 %v1407, 0.6
    %v1412 = vmul.f32 %v1408, 0.6
    %v1413 = vmul.f32 %v1409, 0.6
    %v1414 = vadd.f32 %v1386, %v1410
    %v1415 = vadd.f32 %v1387, %v1411
    %v1416 = vadd.f32 %v1388, %v1412
    %v1417 = vadd.f32 %v1389, %v1413
    %1418 = vst [vmem:[#allocation5 + $0x130] sm:$0xff] %v1414
    %1419 = vst [vmem:[#allocation5 + $0x148] sm:$0xff] %v1415
    %1420 = vst [vmem:[#allocation5 + $0x160] sm:$0xff] %v1416
    %1421 = vst [vmem:[#allocation5 + $0x178] sm:$0xff] %v1417
    // Predicated region
    $region18: #{tpu_custom_call.1} parent=1 // pred_check
      _
    $region19: #{tpu_custom_call.1} parent=1 // pred_check_branch
      %1423 = sbr.rel (0) target = $region21
    $region20: #{tpu_custom_call.1} parent=1 // pred_region
      %s1425 = ssub.s32 6144, 6144
      %1426 = vsyncadd [#allocation4], %s1425
      %s1427 = sshll.u32 [#allocation5], 4
      %s1428 = int_to_ptr.vmem [resolvable:$true] %s1427
      %1433 = dma.vmem_to_hbm [thread:$0]  %s1428, 6144, %s3, [#allocation4], 384, 384, 24
    $region21: #{tpu_custom_call.1} parent=1 // pred_fallthru
      _
    // Predicated region
    $region22: #{tpu_custom_call.1} parent=1 // pred_check
      _
    $region23: #{tpu_custom_call.1} parent=1 // pred_check_branch
      %1435 = sbr.rel (0) target = $region25
    $region24: #{tpu_custom_call.1} parent=1 // pred_region
      %1436 = dma.done [#allocation4], 6144
    $region25: #{tpu_custom_call.1} parent=1 // pred_fallthru
      _
    %1437 = vsyncpa [#allocation3], 1
    %1438 = vsyncpa [#allocation4], 1

</llo_original>
